<compile_context>
chip_gen: v6e
topology: v6e:2x2x1
jax: 0.10.0
libtpu: 0.0.40
codegen_flags: <defaults>
</compile_context>

<pallas_src>
import jax
import jax.numpy as jnp
from jax.experimental import pallas as pl
from jax.experimental.pallas import tpu as pltpu


# ---------------------------------------------------------------------------
# Fused kernel: n x [3x3 conv (stride 1, pad 1) + BatchNorm(train) + ReLU].
# Single invocation, whole batch, both blocks.
# ---------------------------------------------------------------------------
def _unet_conv2_fused_kernel(x_ref, w_ref, sh_ref, g_ref, bt_ref, bc_ref,
                             rd_ref, o_ref):
    # x_ref : (N*H, W*Cp)        f32  lane-dense packed input (Cin padded to Cp)
    # w_ref : (n*3, W*Cp, W*Co)  bf16 banded conv weights (kw + Cin folded, per kh)
    # sh_ref: (2, N*H, N*H)      bf16 row-shift matrices (prev/next, halo-zeroed)
    # g_ref : (n, 1, Co)         f32  BN gamma per block
    # bt_ref: (n, 1, Co)         f32  BN beta per block
    # bc_ref: (Co, W*Co)         f32  channel -> packed-lane broadcast map
    # rd_ref: (W*Co, Co)         f32  packed-lane -> channel reduce map
    # o_ref : (N*H, W*Co)        f32  lane-dense packed output
    NH = x_ref.shape[0]
    Cout = rd_ref.shape[1]
    WCo = o_ref.shape[1]
    n_blocks = g_ref.shape[0]
    inv_cnt = 1.0 / float(NH * (WCo // Cout))          # 1 / (N*H*W)

    bcast_m = bc_ref[...]
    reduce_m = rd_ref[...]
    prev_m = sh_ref[0]                                 # (prev_m @ x)[r] = x[r-1]
    next_m = sh_ref[1]                                 # (next_m @ x)[r] = x[r+1]

    x = x_ref[...]
    for blk in range(n_blocks):
        # ---- 3x3 conv as 3 lane-dense MXU matmuls (one per kh). ------------
        # W-padding is implicit in the banded weights (out-of-range taps hit
        # zero rows); H-padding is folded into the 0/1 shift matrices (exact
        # in bf16), so there is no padded scratch and no sub-sublane slicing.
        xc = x.astype(jnp.bfloat16)
        xp = jnp.dot(prev_m, xc,
                     preferred_element_type=jnp.float32).astype(jnp.bfloat16)
        xn = jnp.dot(next_m, xc,
                     preferred_element_type=jnp.float32).astype(jnp.bfloat16)
        acc = jnp.dot(xp, w_ref[3 * blk + 0],
                      preferred_element_type=jnp.float32)
        acc = acc + jnp.dot(xc, w_ref[3 * blk + 1],
                            preferred_element_type=jnp.float32)
        acc = acc + jnp.dot(xn, w_ref[3 * blk + 2],
                            preferred_element_type=jnp.float32)

        # ---- BatchNorm (training-mode batch stats, biased var) + ReLU. -----
        # Conv bias omitted: a constant per-channel shift is exactly removed
        # by the batch-mean subtraction, so the forward output is unchanged.
        sum_l = jnp.sum(acc, axis=0, keepdims=True)            # (1, W*Co)
        sq_l = jnp.sum(acc * acc, axis=0, keepdims=True)       # (1, W*Co)
        mean_c = jnp.dot(sum_l, reduce_m,
                         preferred_element_type=jnp.float32) * inv_cnt
        ex2_c = jnp.dot(sq_l, reduce_m,
                        preferred_element_type=jnp.float32) * inv_cnt
        var_c = ex2_c - mean_c * mean_c        # f32 sums; eps keeps it safe
        s_c = g_ref[blk] * jax.lax.rsqrt(var_c + 1e-5)          # (1, Co)
        t_c = bt_ref[blk] - mean_c * s_c                        # (1, Co)
        s_l = jnp.dot(s_c, bcast_m, preferred_element_type=jnp.float32)
        t_l = jnp.dot(t_c, bcast_m, preferred_element_type=jnp.float32)
        x = jnp.maximum(acc * s_l + t_l, 0.0)

    o_ref[...] = x.astype(o_ref.dtype)


def unet_conv2_fused(x_packed, params, *, out_lanes):
    """Grid-less pallas_call: whole arrays in VMEM, one invocation."""
    return pl.pallas_call(
        _unet_conv2_fused_kernel,
        out_shape=jax.ShapeDtypeStruct((x_packed.shape[0], out_lanes),
                                       jnp.float32),
        in_specs=[pl.BlockSpec(memory_space=pltpu.MemorySpace.VMEM)] * 7,
        out_specs=pl.BlockSpec(memory_space=pltpu.MemorySpace.VMEM),
    )(x_packed, params["w_banded"], params["shift"], params["gamma"],
      params["beta"], params["bcast"], params["reduce"])


# ---------------------------------------------------------------------------
# Host-side constant construction.
# ---------------------------------------------------------------------------
def _banded_conv_weights(w_oihw, W, cin_pad):
    """(Cout, Cin, 3, 3) OIHW -> (3, W*cin_pad, W*Cout) banded matrices.

    Packed row layout: lane = wi*cin_pad + ci (input), wo*Cout + co (output).
    Zero padding along W is implicit (out-of-range taps never match the band).
    """
    Cout, Cin, KH, KW = w_oihw.shape
    taps = jnp.transpose(w_oihw, (2, 3, 1, 0))               # (kh, kw, Cin, Cout)
    taps = jnp.pad(taps, ((0, 0), (0, 0), (0, cin_pad - Cin), (0, 0)))
    wi = jnp.arange(W)[:, None]                              # input column
    wo = jnp.arange(W)[None, :]                              # output column
    mats = []
    for kh in range(KH):
        m = jnp.zeros((W, cin_pad, W, Cout), jnp.float32)
        for kw in range(KW):
            band = (wi == wo + (kw - 1)).astype(jnp.float32)     # (W, W)
            m = m + band[:, None, :, None] * taps[kh, kw][None, :, None, :]
        mats.append(m.reshape(W * cin_pad, W * Cout))
    return jnp.stack(mats, 0)


def _row_shift_mats(N, H):
    """0/1 matrices: (prev @ x)[r] = x[r-1] (0 at image top), likewise next."""
    NH = N * H
    r = jnp.arange(NH)
    h = r % H
    prev_m = ((r[:, None] - 1 == r[None, :]) & (h[:, None] != 0))
    next_m = ((r[:, None] + 1 == r[None, :]) & (h[:, None] != H - 1))
    return prev_m.astype(jnp.float32), next_m.astype(jnp.float32)


def make_params(key, in_size, out_size, *, N, H, W, n=2, ks=3):
    """Kernel params + PyTorch-layout reference params.

    Mirrors init_weights(..., 'kaiming'): conv weight kaiming_normal_
    (a=0, mode='fan_in'); conv bias keeps PyTorch's default
    U(-1/sqrt(fan_in), 1/sqrt(fan_in)) (used only by the f32 reference — it
    cancels inside training-mode BN); BN weight ~ N(1, 0.02), BN bias = 0.
    """
    assert ks == 3, "banded-weight construction assumes 3x3 kernels"
    cin_pad = max(in_size, out_size)
    assert (W * cin_pad) % 128 == 0 and (W * out_size) % 128 == 0, \
        "pick shapes so the packed lane dim is a multiple of 128"

    w_blocks, gammas, betas, ref_params = [], [], [], []
    cin = in_size
    for _ in range(n):
        key, k_w, k_b, k_g = jax.random.split(key, 4)
        fan_in = cin * ks * ks
        w_oihw = (2.0 / fan_in) ** 0.5 * jax.random.normal(
            k_w, (out_size, cin, ks, ks), dtype=jnp.float32)
        bound = 1.0 / fan_in ** 0.5
        b = jax.random.uniform(k_b, (out_size,), minval=-bound, maxval=bound,
                               dtype=jnp.float32)
        gamma = 1.0 + 0.02 * jax.random.normal(k_g, (out_size,), jnp.float32)
        beta = jnp.zeros((out_size,), jnp.float32)
        w_blocks.append(_banded_conv_weights(w_oihw, W, cin_pad))
        gammas.append(gamma.reshape(1, out_size))
        betas.append(beta.reshape(1, out_size))
        ref_params.append((w_oihw, b, gamma, beta))
        cin = out_size

    w_banded = jnp.concatenate(w_blocks, 0).astype(jnp.bfloat16)
    # VMEM guard: banded weights grow quadratically in W; re-tile before
    # approaching the VMEM limit (v7x: 64 MiB).  Trivial here (~192 KiB).
    assert w_banded.size * 2 < 8 * 1024 * 1024

    prev_m, next_m = _row_shift_mats(N, H)
    lane_ch = jnp.arange(W * out_size) % out_size
    reduce_m = (lane_ch[:, None] == jnp.arange(out_size)[None, :]
                ).astype(jnp.float32)                        # (W*Cout, Cout)

    params = {
        "w_banded": w_banded,                                # (n*3, W*Cp, W*Co) bf16
        "shift": jnp.stack([prev_m, next_m], 0).astype(jnp.bfloat16),
        "gamma": jnp.stack(gammas, 0),                       # (n, 1, Co) f32
        "beta": jnp.stack(betas, 0),                         # (n, 1, Co) f32
        "bcast": reduce_m.T,                                 # (Co, W*Co) f32
        "reduce": reduce_m,                                  # (W*Co, Co) f32
    }
    return params, ref_params


@jax.jit
def unet_conv2_forward(x_nchw, params):
    N, Cin, H, W = x_nchw.shape
    Cout = params["gamma"].shape[-1]
    Cp = params["w_banded"].shape[1] // W
    # NCHW -> lane-dense packed (N*H, W*Cp); channel zero-pad Cin -> Cp.
    # (In a full model, keep the packed layout across adjacent modules and
    #  only do these transposes at the model boundary.)
    x = jnp.transpose(x_nchw, (0, 2, 3, 1)).astype(jnp.float32)
    x = jnp.pad(x, ((0, 0), (0, 0), (0, 0), (0, Cp - Cin)))
    x_packed = x.reshape(N * H, W * Cp)
    out_packed = unet_conv2_fused(x_packed, params, out_lanes=W * Cout)
    # packed -> NCHW (PyTorch convention)
    return jnp.transpose(out_packed.reshape(N, H, W, Cout), (0, 3, 1, 2))


def reference_forward(x_nchw, ref_params):
    """Plain-XLA f32 reference: Conv2d(+bias) -> BatchNorm2d(train) -> ReLU."""
    x = x_nchw
    for w_oihw, b, gamma, beta in ref_params:
        y = jax.lax.conv_general_dilated(
            x, w_oihw, window_strides=(1, 1), padding=((1, 1), (1, 1)),
            dimension_numbers=("NCHW", "OIHW", "NCHW"))
        y = y + b[None, :, None, None]
        mean = jnp.mean(y, axis=(0, 2, 3), keepdims=True)
        var = jnp.mean(jnp.square(y - mean), axis=(0, 2, 3), keepdims=True)
        y = (y - mean) * jax.lax.rsqrt(var + 1e-5)
        y = y * gamma[None, :, None, None] + beta[None, :, None, None]
        x = jnp.maximum(y, 0.0)
    return x


if __name__ == "__main__":
    key = jax.random.PRNGKey(0)
    k_x, k_p = jax.random.split(key)

    N, Cin, H, W = 2, 4, 16, 16
    Cout = 8

    x = jax.random.normal(k_x, (N, Cin, H, W), dtype=jnp.float32)
    params, ref_params = make_params(k_p, Cin, Cout, N=N, H=H, W=W, n=2, ks=3)

    out = unet_conv2_forward(x, params)
    out = jax.block_until_ready(out)

    assert out.shape == (N, Cout, H, W), out.shape
    assert bool(jnp.all(jnp.isfinite(out)))
    assert bool(jnp.all(out >= 0.0))           # ReLU output

    # bf16-matmul kernel vs f32 XLA reference (BN renormalizes the conv, so
    # the bf16 error stays small post-BN).
    ref = jax.block_until_ready(reference_forward(x, ref_params))
    max_err = float(jnp.max(jnp.abs(out - ref)))
    rel_l2 = float(jnp.sqrt(jnp.sum((out - ref) ** 2) /
                            (jnp.sum(ref ** 2) + 1e-12)))
    assert max_err < 1.5e-1 and rel_l2 < 5e-2, (max_err, rel_l2)
    print("KERNEL_OK")
</pallas_src>

<mosaic_0001>
module attributes {stable_mosaic.version = 11 : i64} {
  func.func @_unet_conv2_fused_kernel(%arg0: memref<32x128xf32, #tpu.memory_space<vmem>>, %arg1: memref<6x128x128xbf16, #tpu.memory_space<vmem>>, %arg2: memref<2x32x32xbf16, #tpu.memory_space<vmem>>, %arg3: memref<2x1x8xf32, #tpu.memory_space<vmem>>, %arg4: memref<2x1x8xf32, #tpu.memory_space<vmem>>, %arg5: memref<8x128xf32, #tpu.memory_space<vmem>>, %arg6: memref<128x8xf32, #tpu.memory_space<vmem>>, %arg7: memref<32x128xf32, #tpu.memory_space<vmem>>) attributes {dimension_semantics = [], scalar_prefetch = 0 : i64, scratch_operands = 0 : i64, tpu.core_type = #tpu.core_type<tc>} {
    %c0 = arith.constant 0 : index
    %c0_0 = arith.constant 0 : index
    %0 = vector.load %arg5[%c0, %c0_0] : memref<8x128xf32, #tpu.memory_space<vmem>>, vector<8x128xf32>
    %c0_1 = arith.constant 0 : index
    %c0_2 = arith.constant 0 : index
    %1 = vector.load %arg6[%c0_1, %c0_2] : memref<128x8xf32, #tpu.memory_space<vmem>>, vector<128x8xf32>
    %c0_3 = arith.constant 0 : index
    %c0_4 = arith.constant 0 : index
    %c0_5 = arith.constant 0 : index
    %2 = vector.load %arg2[%c0_3, %c0_4, %c0_5] : memref<2x32x32xbf16, #tpu.memory_space<vmem>>, vector<1x32x32xbf16>
    %3 = vector.shape_cast %2 : vector<1x32x32xbf16> to vector<32x32xbf16>
    %c1 = arith.constant 1 : index
    %c0_6 = arith.constant 0 : index
    %c0_7 = arith.constant 0 : index
    %4 = vector.load %arg2[%c1, %c0_6, %c0_7] : memref<2x32x32xbf16, #tpu.memory_space<vmem>>, vector<1x32x32xbf16>
    %5 = vector.shape_cast %4 : vector<1x32x32xbf16> to vector<32x32xbf16>
    %c0_8 = arith.constant 0 : index
    %c0_9 = arith.constant 0 : index
    %6 = vector.load %arg0[%c0_8, %c0_9] : memref<32x128xf32, #tpu.memory_space<vmem>>, vector<32x128xf32>
    %7 = arith.truncf %6 : vector<32x128xf32> to vector<32x128xbf16>
    %cst = arith.constant dense<0.000000e+00> : vector<32x128xf32>
    %8 = tpu.matmul %3, %7, %cst {dimension_numbers = #tpu.dot_dimension_numbers<[1], [0], [0], [1], [0, 0, 1, 1], [], []>} : vector<32x32xbf16>, vector<32x128xbf16>, vector<32x128xf32> -> vector<32x128xf32>
    %9 = arith.truncf %8 : vector<32x128xf32> to vector<32x128xbf16>
    %cst_10 = arith.constant dense<0.000000e+00> : vector<32x128xf32>
    %10 = tpu.matmul %5, %7, %cst_10 {dimension_numbers = #tpu.dot_dimension_numbers<[1], [0], [0], [1], [0, 0, 1, 1], [], []>} : vector<32x32xbf16>, vector<32x128xbf16>, vector<32x128xf32> -> vector<32x128xf32>
    %11 = arith.truncf %10 : vector<32x128xf32> to vector<32x128xbf16>
    %c0_11 = arith.constant 0 : index
    %c0_12 = arith.constant 0 : index
    %c0_13 = arith.constant 0 : index
    %12 = vector.load %arg1[%c0_11, %c0_12, %c0_13] : memref<6x128x128xbf16, #tpu.memory_space<vmem>>, vector<1x128x128xbf16>
    %13 = vector.shape_cast %12 : vector<1x128x128xbf16> to vector<128x128xbf16>
    %cst_14 = arith.constant dense<0.000000e+00> : vector<32x128xf32>
    %14 = tpu.matmul %9, %13, %cst_14 {dimension_numbers = #tpu.dot_dimension_numbers<[1], [0], [0], [1], [0, 0, 1, 1], [], []>} : vector<32x128xbf16>, vector<128x128xbf16>, vector<32x128xf32> -> vector<32x128xf32>
    %c1_15 = arith.constant 1 : index
    %c0_16 = arith.constant 0 : index
    %c0_17 = arith.constant 0 : index
    %15 = vector.load %arg1[%c1_15, %c0_16, %c0_17] : memref<6x128x128xbf16, #tpu.memory_space<vmem>>, vector<1x128x128xbf16>
    %16 = vector.shape_cast %15 : vector<1x128x128xbf16> to vector<128x128xbf16>
    %cst_18 = arith.constant dense<0.000000e+00> : vector<32x128xf32>
    %17 = tpu.matmul %7, %16, %cst_18 {dimension_numbers = #tpu.dot_dimension_numbers<[1], [0], [0], [1], [0, 0, 1, 1], [], []>} : vector<32x128xbf16>, vector<128x128xbf16>, vector<32x128xf32> -> vector<32x128xf32>
    %18 = arith.addf %14, %17 : vector<32x128xf32>
    %c2 = arith.constant 2 : index
    %c0_19 = arith.constant 0 : index
    %c0_20 = arith.constant 0 : index
    %19 = vector.load %arg1[%c2, %c0_19, %c0_20] : memref<6x128x128xbf16, #tpu.memory_space<vmem>>, vector<1x128x128xbf16>
    %20 = vector.shape_cast %19 : vector<1x128x128xbf16> to vector<128x128xbf16>
    %cst_21 = arith.constant dense<0.000000e+00> : vector<32x128xf32>
    %21 = tpu.matmul %11, %20, %cst_21 {dimension_numbers = #tpu.dot_dimension_numbers<[1], [0], [0], [1], [0, 0, 1, 1], [], []>} : vector<32x128xbf16>, vector<128x128xbf16>, vector<32x128xf32> -> vector<32x128xf32>
    %22 = arith.addf %18, %21 : vector<32x128xf32>
    %cst_22 = arith.constant dense<0.000000e+00> : vector<128xf32>
    %23 = vector.multi_reduction <add>, %22, %cst_22 [0] : vector<32x128xf32> to vector<128xf32>
    %24 = vector.shape_cast %23 : vector<128xf32> to vector<1x128xf32>
    %25 = arith.mulf %22, %22 : vector<32x128xf32>
    %cst_23 = arith.constant dense<0.000000e+00> : vector<128xf32>
    %26 = vector.multi_reduction <add>, %25, %cst_23 [0] : vector<32x128xf32> to vector<128xf32>
    %27 = vector.shape_cast %26 : vector<128xf32> to vector<1x128xf32>
    %cst_24 = arith.constant dense<0.000000e+00> : vector<1x8xf32>
    %28 = tpu.matmul %24, %1, %cst_24 {dimension_numbers = #tpu.dot_dimension_numbers<[1], [0], [0], [1], [0, 0, 1, 1], [], []>} : vector<1x128xf32>, vector<128x8xf32>, vector<1x8xf32> -> vector<1x8xf32>
    %cst_25 = arith.constant 0.001953125 : f32
    %29 = vector.broadcast %cst_25 : f32 to vector<1x8xf32>
    %30 = arith.mulf %28, %29 : vector<1x8xf32>
    %cst_26 = arith.constant dense<0.000000e+00> : vector<1x8xf32>
    %31 = tpu.matmul %27, %1, %cst_26 {dimension_numbers = #tpu.dot_dimension_numbers<[1], [0], [0], [1], [0, 0, 1, 1], [], []>} : vector<1x128xf32>, vector<128x8xf32>, vector<1x8xf32> -> vector<1x8xf32>
    %cst_27 = arith.constant 0.001953125 : f32
    %32 = vector.broadcast %cst_27 : f32 to vector<1x8xf32>
    %33 = arith.mulf %31, %32 : vector<1x8xf32>
    %34 = arith.mulf %30, %30 : vector<1x8xf32>
    %35 = arith.subf %33, %34 : vector<1x8xf32>
    %c0_28 = arith.constant 0 : index
    %c0_29 = arith.constant 0 : index
    %c0_30 = arith.constant 0 : index
    %36 = vector.load %arg3[%c0_28, %c0_29, %c0_30] : memref<2x1x8xf32, #tpu.memory_space<vmem>>, vector<1x1x8xf32>
    %37 = vector.shape_cast %36 : vector<1x1x8xf32> to vector<1x8xf32>
    %cst_31 = arith.constant 9.99999974E-6 : f32
    %38 = vector.broadcast %cst_31 : f32 to vector<1x8xf32>
    %39 = arith.addf %35, %38 : vector<1x8xf32>
    %40 = math.rsqrt %39 : vector<1x8xf32>
    %41 = arith.mulf %37, %40 : vector<1x8xf32>
    %c0_32 = arith.constant 0 : index
    %c0_33 = arith.constant 0 : index
    %c0_34 = arith.constant 0 : index
    %42 = vector.load %arg4[%c0_32, %c0_33, %c0_34] : memref<2x1x8xf32, #tpu.memory_space<vmem>>, vector<1x1x8xf32>
    %43 = vector.shape_cast %42 : vector<1x1x8xf32> to vector<1x8xf32>
    %44 = arith.mulf %30, %41 : vector<1x8xf32>
    %45 = arith.subf %43, %44 : vector<1x8xf32>
    %cst_35 = arith.constant dense<0.000000e+00> : vector<1x128xf32>
    %46 = tpu.matmul %41, %0, %cst_35 {dimension_numbers = #tpu.dot_dimension_numbers<[1], [0], [0], [1], [0, 0, 1, 1], [], []>} : vector<1x8xf32>, vector<8x128xf32>, vector<1x128xf32> -> vector<1x128xf32>
    %cst_36 = arith.constant dense<0.000000e+00> : vector<1x128xf32>
    %47 = tpu.matmul %45, %0, %cst_36 {dimension_numbers = #tpu.dot_dimension_numbers<[1], [0], [0], [1], [0, 0, 1, 1], [], []>} : vector<1x8xf32>, vector<8x128xf32>, vector<1x128xf32> -> vector<1x128xf32>
    %48 = vector.broadcast %46 : vector<1x128xf32> to vector<32x128xf32>
    %49 = arith.mulf %22, %48 : vector<32x128xf32>
    %50 = vector.broadcast %47 : vector<1x128xf32> to vector<32x128xf32>
    %51 = arith.addf %49, %50 : vector<32x128xf32>
    %cst_37 = arith.constant 0.000000e+00 : f32
    %52 = vector.broadcast %cst_37 : f32 to vector<32x128xf32>
    %53 = arith.maximumf %51, %52 : vector<32x128xf32>
    %54 = arith.truncf %53 : vector<32x128xf32> to vector<32x128xbf16>
    %cst_38 = arith.constant dense<0.000000e+00> : vector<32x128xf32>
    %55 = tpu.matmul %3, %54, %cst_38 {dimension_numbers = #tpu.dot_dimension_numbers<[1], [0], [0], [1], [0, 0, 1, 1], [], []>} : vector<32x32xbf16>, vector<32x128xbf16>, vector<32x128xf32> -> vector<32x128xf32>
    %56 = arith.truncf %55 : vector<32x128xf32> to vector<32x128xbf16>
    %cst_39 = arith.constant dense<0.000000e+00> : vector<32x128xf32>
    %57 = tpu.matmul %5, %54, %cst_39 {dimension_numbers = #tpu.dot_dimension_numbers<[1], [0], [0], [1], [0, 0, 1, 1], [], []>} : vector<32x32xbf16>, vector<32x128xbf16>, vector<32x128xf32> -> vector<32x128xf32>
    %58 = arith.truncf %57 : vector<32x128xf32> to vector<32x128xbf16>
    %c3 = arith.constant 3 : index
    %c0_40 = arith.constant 0 : index
    %c0_41 = arith.constant 0 : index
    %59 = vector.load %arg1[%c3, %c0_40, %c0_41] : memref<6x128x128xbf16, #tpu.memory_space<vmem>>, vector<1x128x128xbf16>
    %60 = vector.shape_cast %59 : vector<1x128x128xbf16> to vector<128x128xbf16>
    %cst_42 = arith.constant dense<0.000000e+00> : vector<32x128xf32>
    %61 = tpu.matmul %56, %60, %cst_42 {dimension_numbers = #tpu.dot_dimension_numbers<[1], [0], [0], [1], [0, 0, 1, 1], [], []>} : vector<32x128xbf16>, vector<128x128xbf16>, vector<32x128xf32> -> vector<32x128xf32>
    %c4 = arith.constant 4 : index
    %c0_43 = arith.constant 0 : index
    %c0_44 = arith.constant 0 : index
    %62 = vector.load %arg1[%c4, %c0_43, %c0_44] : memref<6x128x128xbf16, #tpu.memory_space<vmem>>, vector<1x128x128xbf16>
    %63 = vector.shape_cast %62 : vector<1x128x128xbf16> to vector<128x128xbf16>
    %cst_45 = arith.constant dense<0.000000e+00> : vector<32x128xf32>
    %64 = tpu.matmul %54, %63, %cst_45 {dimension_numbers = #tpu.dot_dimension_numbers<[1], [0], [0], [1], [0, 0, 1, 1], [], []>} : vector<32x128xbf16>, vector<128x128xbf16>, vector<32x128xf32> -> vector<32x128xf32>
    %65 = arith.addf %61, %64 : vector<32x128xf32>
    %c5 = arith.constant 5 : index
    %c0_46 = arith.constant 0 : index
    %c0_47 = arith.constant 0 : index
    %66 = vector.load %arg1[%c5, %c0_46, %c0_47] : memref<6x128x128xbf16, #tpu.memory_space<vmem>>, vector<1x128x128xbf16>
    %67 = vector.shape_cast %66 : vector<1x128x128xbf16> to vector<128x128xbf16>
    %cst_48 = arith.constant dense<0.000000e+00> : vector<32x128xf32>
    %68 = tpu.matmul %58, %67, %cst_48 {dimension_numbers = #tpu.dot_dimension_numbers<[1], [0], [0], [1], [0, 0, 1, 1], [], []>} : vector<32x128xbf16>, vector<128x128xbf16>, vector<32x128xf32> -> vector<32x128xf32>
    %69 = arith.addf %65, %68 : vector<32x128xf32>
    %cst_49 = arith.constant dense<0.000000e+00> : vector<128xf32>
    %70 = vector.multi_reduction <add>, %69, %cst_49 [0] : vector<32x128xf32> to vector<128xf32>
    %71 = vector.shape_cast %70 : vector<128xf32> to vector<1x128xf32>
    %72 = arith.mulf %69, %69 : vector<32x128xf32>
    %cst_50 = arith.constant dense<0.000000e+00> : vector<128xf32>
    %73 = vector.multi_reduction <add>, %72, %cst_50 [0] : vector<32x128xf32> to vector<128xf32>
    %74 = vector.shape_cast %73 : vector<128xf32> to vector<1x128xf32>
    %cst_51 = arith.constant dense<0.000000e+00> : vector<1x8xf32>
    %75 = tpu.matmul %71, %1, %cst_51 {dimension_numbers = #tpu.dot_dimension_numbers<[1], [0], [0], [1], [0, 0, 1, 1], [], []>} : vector<1x128xf32>, vector<128x8xf32>, vector<1x8xf32> -> vector<1x8xf32>
    %cst_52 = arith.constant 0.001953125 : f32
    %76 = vector.broadcast %cst_52 : f32 to vector<1x8xf32>
    %77 = arith.mulf %75, %76 : vector<1x8xf32>
    %cst_53 = arith.constant dense<0.000000e+00> : vector<1x8xf32>
    %78 = tpu.matmul %74, %1, %cst_53 {dimension_numbers = #tpu.dot_dimension_numbers<[1], [0], [0], [1], [0, 0, 1, 1], [], []>} : vector<1x128xf32>, vector<128x8xf32>, vector<1x8xf32> -> vector<1x8xf32>
    %cst_54 = arith.constant 0.001953125 : f32
    %79 = vector.broadcast %cst_54 : f32 to vector<1x8xf32>
    %80 = arith.mulf %78, %79 : vector<1x8xf32>
    %81 = arith.mulf %77, %77 : vector<1x8xf32>
    %82 = arith.subf %80, %81 : vector<1x8xf32>
    %c1_55 = arith.constant 1 : index
    %c0_56 = arith.constant 0 : index
    %c0_57 = arith.constant 0 : index
    %83 = vector.load %arg3[%c1_55, %c0_56, %c0_57] : memref<2x1x8xf32, #tpu.memory_space<vmem>>, vector<1x1x8xf32>
    %84 = vector.shape_cast %83 : vector<1x1x8xf32> to vector<1x8xf32>
    %cst_58 = arith.constant 9.99999974E-6 : f32
    %85 = vector.broadcast %cst_58 : f32 to vector<1x8xf32>
    %86 = arith.addf %82, %85 : vector<1x8xf32>
    %87 = math.rsqrt %86 : vector<1x8xf32>
    %88 = arith.mulf %84, %87 : vector<1x8xf32>
    %c1_59 = arith.constant 1 : index
    %c0_60 = arith.constant 0 : index
    %c0_61 = arith.constant 0 : index
    %89 = vector.load %arg4[%c1_59, %c0_60, %c0_61] : memref<2x1x8xf32, #tpu.memory_space<vmem>>, vector<1x1x8xf32>
    %90 = vector.shape_cast %89 : vector<1x1x8xf32> to vector<1x8xf32>
    %91 = arith.mulf %77, %88 : vector<1x8xf32>
    %92 = arith.subf %90, %91 : vector<1x8xf32>
    %cst_62 = arith.constant dense<0.000000e+00> : vector<1x128xf32>
    %93 = tpu.matmul %88, %0, %cst_62 {dimension_numbers = #tpu.dot_dimension_numbers<[1], [0], [0], [1], [0, 0, 1, 1], [], []>} : vector<1x8xf32>, vector<8x128xf32>, vector<1x128xf32> -> vector<1x128xf32>
    %cst_63 = arith.constant dense<0.000000e+00> : vector<1x128xf32>
    %94 = tpu.matmul %92, %0, %cst_63 {dimension_numbers = #tpu.dot_dimension_numbers<[1], [0], [0], [1], [0, 0, 1, 1], [], []>} : vector<1x8xf32>, vector<8x128xf32>, vector<1x128xf32> -> vector<1x128xf32>
    %95 = vector.broadcast %93 : vector<1x128xf32> to vector<32x128xf32>
    %96 = arith.mulf %69, %95 : vector<32x128xf32>
    %97 = vector.broadcast %94 : vector<1x128xf32> to vector<32x128xf32>
    %98 = arith.addf %96, %97 : vector<32x128xf32>
    %cst_64 = arith.constant 0.000000e+00 : f32
    %99 = vector.broadcast %cst_64 : f32 to vector<32x128xf32>
    %100 = arith.maximumf %98, %99 : vector<32x128xf32>
    %c0_65 = arith.constant 0 : index
    %c0_66 = arith.constant 0 : index
    %101 = vector.load %arg7[%c0_65, %c0_66] : memref<32x128xf32, #tpu.memory_space<vmem>>, vector<32x128xf32>
    tpu.vector_store %arg7[%c0_65, %c0_66], %100 {strides = array<i32>} : memref<32x128xf32, #tpu.memory_space<vmem>>, vector<32x128xf32>,
    return
  }
}

</mosaic_0001>

<llo_original>
// kernel: unet_conv2_forward.1
$region0: #{unet_conv2_forward.1}
  #allocation0 [shape = 'u32[]', space=smem, size = 0x4, offset = 0x4, fixed_abs, tag = 'smem constant byte address 0x4 - core index']
  #allocation1 [shape = 'u32[144,128]{1,0:T(1,128)}', space=vmem, size = 0x12000, scoped, tag = 'internal scratch']
  %s0 = inlined_call_operand.vmem [shape: f32[32,128], index: 0, kind: input, shape index: {}]
  %s1 = inlined_call_operand.vmem [shape: bf16[6,128,128], index: 1, kind: input, shape index: {}]
  %s2 = inlined_call_operand.vmem [shape: bf16[2,32,32], index: 2, kind: input, shape index: {}]
  %s3 = inlined_call_operand.vmem [shape: f32[2,1,8], index: 3, kind: input, shape index: {}]
  %s4 = inlined_call_operand.vmem [shape: f32[2,1,8], index: 4, kind: input, shape index: {}]
  %s5 = inlined_call_operand.vmem [shape: f32[8,128], index: 5, kind: input, shape index: {}]
  %s6 = inlined_call_operand.vmem [shape: f32[128,8], index: 6, kind: input, shape index: {}]
  %s7 = inlined_call_operand.vmem [shape: f32[32,128], index: 7, kind: output, shape index: {}]
  %s8 = sld [smem:[#allocation0]]
  $region38: #{unet_conv2_forward.1} parent=0
    _
  %s10 = ssub.s32 1, %s8
  %s11 = scalar_select 0, %s10, %s8
  // Predicated region
  $region2: #{unet_conv2_forward.1} parent=0 // pred_check
    _
  $region3: #{unet_conv2_forward.1} parent=0 // pred_check_branch
    %13 = sbr.rel (0) target = $region5
  $region4: #{unet_conv2_forward.1} parent=0 // pred_region
    _
  $region5: #{unet_conv2_forward.1} parent=0 // pred_fallthru
    _
  // Predicated region
  $region6: #{unet_conv2_forward.1} parent=0 // pred_check
    _
  $region7: #{unet_conv2_forward.1} parent=0 // pred_check_branch
    %15 = sbr.rel (0) target = $region9
  $region8: #{unet_conv2_forward.1} parent=0 // pred_region
    _
  $region9: #{unet_conv2_forward.1} parent=0 // pred_fallthru
    _
  // Predicated region
  $region10: #{unet_conv2_forward.1} parent=0 // pred_check
    _
  $region11: #{unet_conv2_forward.1} parent=0 // pred_check_branch
    %17 = sbr.rel (0) target = $region13
  $region12: #{unet_conv2_forward.1} parent=0 // pred_region
    _
  $region13: #{unet_conv2_forward.1} parent=0 // pred_fallthru
    _
  // Predicated region
  $region14: #{unet_conv2_forward.1} parent=0 // pred_check
    _
  $region15: #{unet_conv2_forward.1} parent=0 // pred_check_branch
    %19 = sbr.rel (0) target = $region17
  $region16: #{unet_conv2_forward.1} parent=0 // pred_region
    _
  $region17: #{unet_conv2_forward.1} parent=0 // pred_fallthru
    _
  // Predicated region
  $region18: #{unet_conv2_forward.1} parent=0 // pred_check
    _
  $region19: #{unet_conv2_forward.1} parent=0 // pred_check_branch
    %21 = sbr.rel (0) target = $region21
  $region20: #{unet_conv2_forward.1} parent=0 // pred_region
    _
  $region21: #{unet_conv2_forward.1} parent=0 // pred_fallthru
    _
  // Predicated region
  $region22: #{unet_conv2_forward.1} parent=0 // pred_check
    _
  $region23: #{unet_conv2_forward.1} parent=0 // pred_check_branch
    %23 = sbr.rel (0) target = $region25
  $region24: #{unet_conv2_forward.1} parent=0 // pred_region
    _
  $region25: #{unet_conv2_forward.1} parent=0 // pred_fallthru
    _
  // Predicated region
  $region26: #{unet_conv2_forward.1} parent=0 // pred_check
    _
  $region27: #{unet_conv2_forward.1} parent=0 // pred_check_branch
    %25 = sbr.rel (0) target = $region29
  $region28: #{unet_conv2_forward.1} parent=0 // pred_region
    _
  $region29: #{unet_conv2_forward.1} parent=0 // pred_fallthru
    _
  %v27 = vld [vmem:[%s5] sm:$0xff]
  %v28 = vld [vmem:[%s6] sm:$0xff]
  %v29 = vld [vmem:[%s6 + $0x8] sm:$0xff]
  %v30 = vld [vmem:[%s6 + $0x10] sm:$0xff]
  %v31 = vld [vmem:[%s6 + $0x18] sm:$0xff]
  %v32 = vld [vmem:[%s6 + $0x20] sm:$0xff]
  %v33 = vld [vmem:[%s6 + $0x28] sm:$0xff]
  %v34 = vld [vmem:[%s6 + $0x30] sm:$0xff]
  %v35 = vld [vmem:[%s6 + $0x38] sm:$0xff]
  %v36 = vld [vmem:[%s6 + $0x40] sm:$0xff]
  %v37 = vld [vmem:[%s6 + $0x48] sm:$0xff]
  %v38 = vld [vmem:[%s6 + $0x50] sm:$0xff]
  %v39 = vld [vmem:[%s6 + $0x58] sm:$0xff]
  %v40 = vld [vmem:[%s6 + $0x60] sm:$0xff]
  %v41 = vld [vmem:[%s6 + $0x68] sm:$0xff]
  %v42 = vld [vmem:[%s6 + $0x70] sm:$0xff]
  %v43 = vld [vmem:[%s6 + $0x78] sm:$0xff]
  %v44 = vld [vmem:[%s2] sm:$0xf]
  %v45 = vld [vmem:[%s2 + $0x4] sm:$0xf]
  %v46 = vld [vmem:[%s2 + $0x8] sm:$0xf]
  %v47 = vld [vmem:[%s2 + $0xc] sm:$0xf]
  %s48 = scalar_lea.vmem %s2, 16
  %v49 = vld [vmem:[%s48] sm:$0xf]
  %v50 = vld [vmem:[%s48 + $0x4] sm:$0xf]
  %v51 = vld [vmem:[%s48 + $0x8] sm:$0xf]
  %v52 = vld [vmem:[%s48 + $0xc] sm:$0xf]
  %v53 = vld [vmem:[%s0] sm:$0xff]
  %v54 = vld [vmem:[%s0 + $0x8] sm:$0xff]
  %v55 = vld [vmem:[%s0 + $0x10] sm:$0xff]
  %v56 = vld [vmem:[%s0 + $0x18] sm:$0xff]
  %v57 = vpack.c.bf16 %v54, %v53
  %v58 = vpack.c.bf16 %v56, %v55
  %v63 = vunpack.c.l.b16 %v44
  %v64 = vunpack.c.l.b16 %v45
  %v65 = vunpack.c.l.b16 %v46
  %v66 = vunpack.c.l.b16 %v47
  %v67 = vpack.c.b16 %v64, %v63
  %v68 = vpack.c.b16 %v66, %v65
  %vm69 = vcmask 261120
  %v71 = vsel %vm69, %v67, 0
  %v74 = vsel %vm69, %v68, 0
  %76 = vmatprep.subr.bf16.mxu0 0
  %77 = vmatpush1.bf16.msra.mxu0 0
  %78 = vmatprep.subr.bf16.mxu0 0
  %79 = vmatpush1.bf16.msra.mxu0 0
  %80 = vmatprep.subr.bf16.mxu0 0
  %81 = vmatpush1.bf16.msra.mxu0 0
  %82 = vmatprep.subr.bf16.mxu0 0
  %83 = vmatpush1.bf16.msra.mxu0 0
  %84 = vmatprep.subr.bf16.mxu0 0
  %85 = vmatpush1.bf16.msra.mxu0 0
  %86 = vmatprep.subr.bf16.mxu0 0
  %87 = vmatpush1.bf16.msra.mxu0 0
  %88 = vmatprep.subr.bf16.mxu0 0
  %89 = vmatpush1.bf16.msra.mxu0 %v58
  %90 = vmatprep.subr.bf16.mxu0 0
  %91 = vmatpush1.bf16.msra.mxu0 %v57
  %92 = vmatprep.subr.bf16.mxu0 0
  %93 = vmatpush2.bf16.msra.mxu0 0
  %94 = vmatprep.subr.bf16.mxu0 0
  %95 = vmatpush2.bf16.msra.mxu0 0
  %96 = vmatprep.subr.bf16.mxu0 0
  %97 = vmatpush2.bf16.msra.mxu0 0
  %98 = vmatprep.subr.bf16.mxu0 0
  %99 = vmatpush2.bf16.msra.mxu0 0
  %100 = vmatprep.subr.bf16.mxu0 0
  %101 = vmatpush2.bf16.msra.mxu0 0
  %102 = vmatprep.subr.bf16.mxu0 0
  %103 = vmatpush2.bf16.msra.mxu0 0
  %104 = vmatprep.subr.bf16.mxu0 0
  %105 = vmatpush2.bf16.msra.mxu0 0
  %106 = vmatprep.subr.bf16.mxu0 0
  %107 = vmatpush2.bf16.msra.mxu0 0
  %108 = vmatprep.mubr.bf16.mxu0 0
  %109 = vmatmul.mubr.bf16.gmra.mxu0 %v71
  %v110 = vpop.f32.mrf.mxu0
  %v111 = vadd.f32 0.0, %v110
  %v112 = vpop.f32.mrf.mxu0
  %v113 = vpop.f32.mrf.mxu0
  %v114 = vadd.f32 0.0, %v113
  %v115 = vpop.f32.mrf.mxu0
  %116 = vmatprep.mubr.bf16.mxu0 0
  %117 = vmatmul.mubr.bf16.gmra.mxu0 %v74
  %v118 = vpop.f32.mrf.mxu0
  %v119 = vadd.f32 0.0, %v118
  %v120 = vpop.f32.mrf.mxu0
  %v121 = vpop.f32.mrf.mxu0
  %v122 = vadd.f32 0.0, %v121
  %v123 = vpop.f32.mrf.mxu0
  %124 = vdwg.mxu0
  %v125 = vpack.c.bf16 %v114, %v111
  %v126 = vpack.c.bf16 %v122, %v119
  %v131 = vunpack.c.l.b16 %v49
  %v132 = vunpack.c.l.b16 %v50
  %v133 = vunpack.c.l.b16 %v51
  %v134 = vunpack.c.l.b16 %v52
  %v135 = vpack.c.b16 %v132, %v131
  %v136 = vpack.c.b16 %v134, %v133
  %v138 = vsel %vm69, %v135, 0
  %v141 = vsel %vm69, %v136, 0
  %143 = vmatprep.subr.bf16.mxu0 0
  %144 = vmatpush1.bf16.msra.mxu0 0
  %145 = vmatprep.subr.bf16.mxu0 0
  %146 = vmatpush1.bf16.msra.mxu0 0
  %147 = vmatprep.subr.bf16.mxu0 0
  %148 = vmatpush1.bf16.msra.mxu0 0
  %149 = vmatprep.subr.bf16.mxu0 0
  %150 = vmatpush1.bf16.msra.mxu0 0
  %151 = vmatprep.subr.bf16.mxu0 0
  %152 = vmatpush1.bf16.msra.mxu0 0
  %153 = vmatprep.subr.bf16.mxu0 0
  %154 = vmatpush1.bf16.msra.mxu0 0
  %155 = vmatprep.subr.bf16.mxu0 0
  %156 = vmatpush1.bf16.msra.mxu0 %v58
  %157 = vmatprep.subr.bf16.mxu0 0
  %158 = vmatpush1.bf16.msra.mxu0 %v57
  %159 = vmatprep.subr.bf16.mxu0 0
  %160 = vmatpush2.bf16.msra.mxu0 0
  %161 = vmatprep.subr.bf16.mxu0 0
  %162 = vmatpush2.bf16.msra.mxu0 0
  %163 = vmatprep.subr.bf16.mxu0 0
  %164 = vmatpush2.bf16.msra.mxu0 0
  %165 = vmatprep.subr.bf16.mxu0 0
  %166 = vmatpush2.bf16.msra.mxu0 0
  %167 = vmatprep.subr.bf16.mxu0 0
  %168 = vmatpush2.bf16.msra.mxu0 0
  %169 = vmatprep.subr.bf16.mxu0 0
  %170 = vmatpush2.bf16.msra.mxu0 0
  %171 = vmatprep.subr.bf16.mxu0 0
  %172 = vmatpush2.bf16.msra.mxu0 0
  %173 = vmatprep.subr.bf16.mxu0 0
  %174 = vmatpush2.bf16.msra.mxu0 0
  %175 = vmatprep.mubr.bf16.mxu0 0
  %176 = vmatmul.mubr.bf16.gmra.mxu0 %v138
  %v177 = vpop.f32.mrf.mxu0
  %v178 = vadd.f32 0.0, %v177
  %v179 = vpop.f32.mrf.mxu0
  %v180 = vpop.f32.mrf.mxu0
  %v181 = vadd.f32 0.0, %v180
  %v182 = vpop.f32.mrf.mxu0
  %183 = vmatprep.mubr.bf16.mxu0 0
  %184 = vmatmul.mubr.bf16.gmra.mxu0 %v141
  %v185 = vpop.f32.mrf.mxu0
  %v186 = vadd.f32 0.0, %v185
  %v187 = vpop.f32.mrf.mxu0
  %v188 = vpop.f32.mrf.mxu0
  %v189 = vadd.f32 0.0, %v188
  %v190 = vpop.f32.mrf.mxu0
  %191 = vdwg.mxu0
  %v192 = vpack.c.bf16 %v181, %v178
  %v193 = vpack.c.bf16 %v189, %v186
  %v194 = vld [vmem:[%s1] sm:$0xf]
  %v195 = vld [vmem:[%s1 + $0x4] sm:$0xf]
  %v196 = vld [vmem:[%s1 + $0x8] sm:$0xf]
  %v197 = vld [vmem:[%s1 + $0xc] sm:$0xf]
  %v198 = vld [vmem:[%s1 + $0x10] sm:$0xf]
  %v199 = vld [vmem:[%s1 + $0x14] sm:$0xf]
  %v200 = vld [vmem:[%s1 + $0x18] sm:$0xf]
  %v201 = vld [vmem:[%s1 + $0x1c] sm:$0xf]
  %v202 = vld [vmem:[%s1 + $0x20] sm:$0xf]
  %v203 = vld [vmem:[%s1 + $0x24] sm:$0xf]
  %v204 = vld [vmem:[%s1 + $0x28] sm:$0xf]
  %v205 = vld [vmem:[%s1 + $0x2c] sm:$0xf]
  %v206 = vld [vmem:[%s1 + $0x30] sm:$0xf]
  %v207 = vld [vmem:[%s1 + $0x34] sm:$0xf]
  %v208 = vld [vmem:[%s1 + $0x38] sm:$0xf]
  %v209 = vld [vmem:[%s1 + $0x3c] sm:$0xf]
  %s210 = scalar_lea.vmem %s1, 64
  %v211 = vld [vmem:[%s210] sm:$0xf]
  %v212 = vld [vmem:[%s210 + $0x4] sm:$0xf]
  %v213 = vld [vmem:[%s210 + $0x8] sm:$0xf]
  %v214 = vld [vmem:[%s210 + $0xc] sm:$0xf]
  %v215 = vld [vmem:[%s210 + $0x10] sm:$0xf]
  %v216 = vld [vmem:[%s210 + $0x14] sm:$0xf]
  %v217 = vld [vmem:[%s210 + $0x18] sm:$0xf]
  %v218 = vld [vmem:[%s210 + $0x1c] sm:$0xf]
  %v219 = vld [vmem:[%s210 + $0x20] sm:$0xf]
  %v220 = vld [vmem:[%s210 + $0x24] sm:$0xf]
  %v221 = vld [vmem:[%s210 + $0x28] sm:$0xf]
  %v222 = vld [vmem:[%s210 + $0x2c] sm:$0xf]
  %v223 = vld [vmem:[%s210 + $0x30] sm:$0xf]
  %v224 = vld [vmem:[%s210 + $0x34] sm:$0xf]
  %v225 = vld [vmem:[%s210 + $0x38] sm:$0xf]
  %v226 = vld [vmem:[%s210 + $0x3c] sm:$0xf]
  %v243 = vunpack.c.l.b16 %v211
  %v244 = vunpack.c.l.b16 %v212
  %v245 = vunpack.c.l.b16 %v213
  %v246 = vunpack.c.l.b16 %v214
  %v247 = vunpack.c.l.b16 %v215
  %v248 = vunpack.c.l.b16 %v216
  %v249 = vunpack.c.l.b16 %v217
  %v250 = vunpack.c.l.b16 %v218
  %v251 = vunpack.c.l.b16 %v219
  %v252 = vunpack.c.l.b16 %v220
  %v253 = vunpack.c.l.b16 %v221
  %v254 = vunpack.c.l.b16 %v222
  %v255 = vunpack.c.l.b16 %v223
  %v256 = vunpack.c.l.b16 %v224
  %v257 = vunpack.c.l.b16 %v225
  %v258 = vunpack.c.l.b16 %v226
  %v259 = vpack.c.b16 %v244, %v243
  %v260 = vpack.c.b16 %v246, %v245
  %v261 = vpack.c.b16 %v248, %v247
  %v262 = vpack.c.b16 %v250, %v249
  %v263 = vpack.c.b16 %v252, %v251
  %v264 = vpack.c.b16 %v254, %v253
  %v265 = vpack.c.b16 %v256, %v255
  %v266 = vpack.c.b16 %v258, %v257
  %275 = vmatprep.subr.bf16.mxu0 0
  %276 = vmatpush1.bf16.msra.mxu0 %v266
  %277 = vmatprep.subr.bf16.mxu0 0
  %278 = vmatpush1.bf16.msra.mxu0 %v265
  %279 = vmatprep.subr.bf16.mxu0 0
  %280 = vmatpush1.bf16.msra.mxu0 %v264
  %281 = vmatprep.subr.bf16.mxu0 0
  %282 = vmatpush1.bf16.msra.mxu0 %v263
  %283 = vmatprep.subr.bf16.mxu0 0
  %284 = vmatpush1.bf16.msra.mxu0 %v262
  %285 = vmatprep.subr.bf16.mxu0 0
  %286 = vmatpush1.bf16.msra.mxu0 %v261
  %287 = vmatprep.subr.bf16.mxu0 0
  %288 = vmatpush1.bf16.msra.mxu0 %v260
  %289 = vmatprep.subr.bf16.mxu0 0
  %290 = vmatpush1.bf16.msra.mxu0 %v259
  %291 = vmatprep.subr.bf16.mxu0 0
  %292 = vmatpush2.bf16.msra.mxu0 0
  %293 = vmatprep.subr.bf16.mxu0 0
  %294 = vmatpush2.bf16.msra.mxu0 0
  %295 = vmatprep.subr.bf16.mxu0 0
  %296 = vmatpush2.bf16.msra.mxu0 0
  %297 = vmatprep.subr.bf16.mxu0 0
  %298 = vmatpush2.bf16.msra.mxu0 0
  %299 = vmatprep.subr.bf16.mxu0 0
  %300 = vmatpush2.bf16.msra.mxu0 0
  %301 = vmatprep.subr.bf16.mxu0 0
  %302 = vmatpush2.bf16.msra.mxu0 0
  %303 = vmatprep.subr.bf16.mxu0 0
  %304 = vmatpush2.bf16.msra.mxu0 0
  %305 = vmatprep.subr.bf16.mxu0 0
  %306 = vmatpush2.bf16.msra.mxu0 0
  %307 = vmatprep.mubr.bf16.mxu0 0
  %308 = vmatmul.mubr.bf16.gmra.mxu0 %v57
  %v309 = vpop.f32.mrf.mxu0
  %v310 = vadd.f32 0.0, %v309
  %v311 = vpop.f32.mrf.mxu0
  %v312 = vpop.f32.mrf.mxu0
  %v313 = vadd.f32 0.0, %v312
  %v314 = vpop.f32.mrf.mxu0
  %315 = vmatprep.mubr.bf16.mxu0 0
  %316 = vmatmul.mubr.bf16.gmra.mxu0 %v58
  %v317 = vpop.f32.mrf.mxu0
  %v318 = vadd.f32 0.0, %v317
  %v319 = vpop.f32.mrf.mxu0
  %v320 = vpop.f32.mrf.mxu0
  %v321 = vadd.f32 0.0, %v320
  %v322 = vpop.f32.mrf.mxu0
  %323 = vdwg.mxu0
  %v340 = vunpack.c.l.b16 %v194
  %v341 = vunpack.c.l.b16 %v195
  %v342 = vunpack.c.l.b16 %v196
  %v343 = vunpack.c.l.b16 %v197
  %v344 = vunpack.c.l.b16 %v198
  %v345 = vunpack.c.l.b16 %v199
  %v346 = vunpack.c.l.b16 %v200
  %v347 = vunpack.c.l.b16 %v201
  %v348 = vunpack.c.l.b16 %v202
  %v349 = vunpack.c.l.b16 %v203
  %v350 = vunpack.c.l.b16 %v204
  %v351 = vunpack.c.l.b16 %v205
  %v352 = vunpack.c.l.b16 %v206
  %v353 = vunpack.c.l.b16 %v207
  %v354 = vunpack.c.l.b16 %v208
  %v355 = vunpack.c.l.b16 %v209
  %v356 = vpack.c.b16 %v341, %v340
  %v357 = vpack.c.b16 %v343, %v342
  %v358 = vpack.c.b16 %v345, %v344
  %v359 = vpack.c.b16 %v347, %v346
  %v360 = vpack.c.b16 %v349, %v348
  %v361 = vpack.c.b16 %v351, %v350
  %v362 = vpack.c.b16 %v353, %v352
  %v363 = vpack.c.b16 %v355, %v354
  %372 = vmatprep.subr.bf16.mxu0 0
  %373 = vmatpush1.bf16.msra.mxu0 %v363
  %374 = vmatprep.subr.bf16.mxu0 0
  %375 = vmatpush1.bf16.msra.mxu0 %v362
  %376 = vmatprep.subr.bf16.mxu0 0
  %377 = vmatpush1.bf16.msra.mxu0 %v361
  %378 = vmatprep.subr.bf16.mxu0 0
  %379 = vmatpush1.bf16.msra.mxu0 %v360
  %380 = vmatprep.subr.bf16.mxu0 0
  %381 = vmatpush1.bf16.msra.mxu0 %v359
  %382 = vmatprep.subr.bf16.mxu0 0
  %383 = vmatpush1.bf16.msra.mxu0 %v358
  %384 = vmatprep.subr.bf16.mxu0 0
  %385 = vmatpush1.bf16.msra.mxu0 %v357
  %386 = vmatprep.subr.bf16.mxu0 0
  %387 = vmatpush1.bf16.msra.mxu0 %v356
  %388 = vmatprep.subr.bf16.mxu0 0
  %389 = vmatpush2.bf16.msra.mxu0 0
  %390 = vmatprep.subr.bf16.mxu0 0
  %391 = vmatpush2.bf16.msra.mxu0 0
  %392 = vmatprep.subr.bf16.mxu0 0
  %393 = vmatpush2.bf16.msra.mxu0 0
  %394 = vmatprep.subr.bf16.mxu0 0
  %395 = vmatpush2.bf16.msra.mxu0 0
  %396 = vmatprep.subr.bf16.mxu0 0
  %397 = vmatpush2.bf16.msra.mxu0 0
  %398 = vmatprep.subr.bf16.mxu0 0
  %399 = vmatpush2.bf16.msra.mxu0 0
  %400 = vmatprep.subr.bf16.mxu0 0
  %401 = vmatpush2.bf16.msra.mxu0 0
  %402 = vmatprep.subr.bf16.mxu0 0
  %403 = vmatpush2.bf16.msra.mxu0 0
  %404 = vmatprep.mubr.bf16.mxu0 0
  %405 = vmatmul.mubr.bf16.gmra.mxu0 %v125
  %v406 = vpop.f32.mrf.mxu0
  %v407 = vadd.f32 %v310, %v406
  %v408 = vpop.f32.mrf.mxu0
  %v409 = vpop.f32.mrf.mxu0
  %v410 = vadd.f32 %v313, %v409
  %v411 = vpop.f32.mrf.mxu0
  %412 = vmatprep.mubr.bf16.mxu0 0
  %413 = vmatmul.mubr.bf16.gmra.mxu0 %v126
  %v414 = vpop.f32.mrf.mxu0
  %v415 = vadd.f32 %v318, %v414
  %v416 = vpop.f32.mrf.mxu0
  %v417 = vpop.f32.mrf.mxu0
  %v418 = vadd.f32 %v321, %v417
  %v419 = vpop.f32.mrf.mxu0
  %420 = vdwg.mxu0
  %s421 = scalar_lea.vmem %s1, 128
  %v422 = vld [vmem:[%s421] sm:$0xf]
  %v423 = vld [vmem:[%s421 + $0x4] sm:$0xf]
  %v424 = vld [vmem:[%s421 + $0x8] sm:$0xf]
  %v425 = vld [vmem:[%s421 + $0xc] sm:$0xf]
  %v426 = vld [vmem:[%s421 + $0x10] sm:$0xf]
  %v427 = vld [vmem:[%s421 + $0x14] sm:$0xf]
  %v428 = vld [vmem:[%s421 + $0x18] sm:$0xf]
  %v429 = vld [vmem:[%s421 + $0x1c] sm:$0xf]
  %v430 = vld [vmem:[%s421 + $0x20] sm:$0xf]
  %v431 = vld [vmem:[%s421 + $0x24] sm:$0xf]
  %v432 = vld [vmem:[%s421 + $0x28] sm:$0xf]
  %v433 = vld [vmem:[%s421 + $0x2c] sm:$0xf]
  %v434 = vld [vmem:[%s421 + $0x30] sm:$0xf]
  %v435 = vld [vmem:[%s421 + $0x34] sm:$0xf]
  %v436 = vld [vmem:[%s421 + $0x38] sm:$0xf]
  %v437 = vld [vmem:[%s421 + $0x3c] sm:$0xf]
  %v454 = vunpack.c.l.b16 %v422
  %v455 = vunpack.c.l.b16 %v423
  %v456 = vunpack.c.l.b16 %v424
  %v457 = vunpack.c.l.b16 %v425
  %v458 = vunpack.c.l.b16 %v426
  %v459 = vunpack.c.l.b16 %v427
  %v460 = vunpack.c.l.b16 %v428
  %v461 = vunpack.c.l.b16 %v429
  %v462 = vunpack.c.l.b16 %v430
  %v463 = vunpack.c.l.b16 %v431
  %v464 = vunpack.c.l.b16 %v432
  %v465 = vunpack.c.l.b16 %v433
  %v466 = vunpack.c.l.b16 %v434
  %v467 = vunpack.c.l.b16 %v435
  %v468 = vunpack.c.l.b16 %v436
  %v469 = vunpack.c.l.b16 %v437
  %v470 = vpack.c.b16 %v455, %v454
  %v471 = vpack.c.b16 %v457, %v456
  %v472 = vpack.c.b16 %v459, %v458
  %v473 = vpack.c.b16 %v461, %v460
  %v474 = vpack.c.b16 %v463, %v462
  %v475 = vpack.c.b16 %v465, %v464
  %v476 = vpack.c.b16 %v467, %v466
  %v477 = vpack.c.b16 %v469, %v468
  %486 = vmatprep.subr.bf16.mxu0 0
  %487 = vmatpush1.bf16.msra.mxu0 %v477
  %488 = vmatprep.subr.bf16.mxu0 0
  %489 = vmatpush1.bf16.msra.mxu0 %v476
  %490 = vmatprep.subr.bf16.mxu0 0
  %491 = vmatpush1.bf16.msra.mxu0 %v475
  %492 = vmatprep.subr.bf16.mxu0 0
  %493 = vmatpush1.bf16.msra.mxu0 %v474
  %494 = vmatprep.subr.bf16.mxu0 0
  %495 = vmatpush1.bf16.msra.mxu0 %v473
  %496 = vmatprep.subr.bf16.mxu0 0
  %497 = vmatpush1.bf16.msra.mxu0 %v472
  %498 = vmatprep.subr.bf16.mxu0 0
  %499 = vmatpush1.bf16.msra.mxu0 %v471
  %500 = vmatprep.subr.bf16.mxu0 0
  %501 = vmatpush1.bf16.msra.mxu0 %v470
  %502 = vmatprep.subr.bf16.mxu0 0
  %503 = vmatpush2.bf16.msra.mxu0 0
  %504 = vmatprep.subr.bf16.mxu0 0
  %505 = vmatpush2.bf16.msra.mxu0 0
  %506 = vmatprep.subr.bf16.mxu0 0
  %507 = vmatpush2.bf16.msra.mxu0 0
  %508 = vmatprep.subr.bf16.mxu0 0
  %509 = vmatpush2.bf16.msra.mxu0 0
  %510 = vmatprep.subr.bf16.mxu0 0
  %511 = vmatpush2.bf16.msra.mxu0 0
  %512 = vmatprep.subr.bf16.mxu0 0
  %513 = vmatpush2.bf16.msra.mxu0 0
  %514 = vmatprep.subr.bf16.mxu0 0
  %515 = vmatpush2.bf16.msra.mxu0 0
  %516 = vmatprep.subr.bf16.mxu0 0
  %517 = vmatpush2.bf16.msra.mxu0 0
  %518 = vmatprep.mubr.bf16.mxu0 0
  %519 = vmatmul.mubr.bf16.gmra.mxu0 %v192
  %v520 = vpop.f32.mrf.mxu0
  %v521 = vadd.f32 0.0, %v520
  %v522 = vpop.f32.mrf.mxu0
  %v523 = vpop.f32.mrf.mxu0
  %v524 = vadd.f32 0.0, %v523
  %v525 = vpop.f32.mrf.mxu0
  %526 = vmatprep.mubr.bf16.mxu0 0
  %527 = vmatmul.mubr.bf16.gmra.mxu0 %v193
  %v528 = vpop.f32.mrf.mxu0
  %v529 = vadd.f32 0.0, %v528
  %v530 = vpop.f32.mrf.mxu0
  %v531 = vpop.f32.mrf.mxu0
  %v532 = vadd.f32 0.0, %v531
  %v533 = vpop.f32.mrf.mxu0
  %534 = vdwg.mxu0
  %v535 = vadd.f32 %v407, %v521
  %v536 = vadd.f32 %v410, %v524
  %v537 = vadd.f32 %v415, %v529
  %v538 = vadd.f32 %v418, %v532
  %v539 = vadd.f32 %v535, %v536
  %v540 = vadd.f32 %v539, %v537
  %v541 = vadd.f32 %v540, %v538
  %v542 = vrot.slane %v541, 4
  %v543 = vadd.f32 %v541, %v542
  %v544 = vrot.slane %v543, 2
  %v545 = vadd.f32 %v543, %v544
  %v546 = vrot.slane %v545, 1
  %v547 = vadd.f32 %v545, %v546
  %v548 = vmul.f32 %v535, %v535
  %v549 = vmul.f32 %v536, %v536
  %v550 = vmul.f32 %v537, %v537
  %v551 = vmul.f32 %v538, %v538
  %v552 = vadd.f32 %v548, %v549
  %v553 = vadd.f32 %v552, %v550
  %v554 = vadd.f32 %v553, %v551
  %v555 = vrot.slane %v554, 4
  %v556 = vadd.f32 %v554, %v555
  %v557 = vrot.slane %v556, 2
  %v558 = vadd.f32 %v556, %v557
  %v559 = vrot.slane %v558, 1
  %v560 = vadd.f32 %v558, %v559
  %561 = vmatprep.subr.mxu0 0.0
  %562 = vmatpush1.msra.mxu0 %v43
  %563 = vmatprep.subr.mxu0 0.0
  %564 = vmatpush1.msra.mxu0 %v42
  %565 = vmatprep.subr.mxu0 0.0
  %566 = vmatpush1.msra.mxu0 %v41
  %567 = vmatprep.subr.mxu0 0.0
  %568 = vmatpush1.msra.mxu0 %v40
  %569 = vmatprep.subr.mxu0 0.0
  %570 = vmatpush1.msra.mxu0 %v39
  %571 = vmatprep.subr.mxu0 0.0
  %572 = vmatpush1.msra.mxu0 %v38
  %573 = vmatprep.subr.mxu0 0.0
  %574 = vmatpush1.msra.mxu0 %v37
  %575 = vmatprep.subr.mxu0 0.0
  %576 = vmatpush1.msra.mxu0 %v36
  %577 = vmatprep.subr.mxu0 0.0
  %578 = vmatpush1.msra.mxu0 %v35
  %579 = vmatprep.subr.mxu0 0.0
  %580 = vmatpush1.msra.mxu0 %v34
  %581 = vmatprep.subr.mxu0 0.0
  %582 = vmatpush1.msra.mxu0 %v33
  %583 = vmatprep.subr.mxu0 0.0
  %584 = vmatpush1.msra.mxu0 %v32
  %585 = vmatprep.subr.mxu0 0.0
  %586 = vmatpush1.msra.mxu0 %v31
  %587 = vmatprep.subr.mxu0 0.0
  %588 = vmatpush1.msra.mxu0 %v30
  %589 = vmatprep.subr.mxu0 0.0
  %590 = vmatpush1.msra.mxu0 %v29
  %591 = vmatprep.subr.mxu0 0.0
  %592 = vmatpush1.msra.mxu0 %v28
  %593 = vmatprep.subr.mxu0 0.0
  %594 = vmatpush2.msra.mxu0 0.0
  %595 = vmatprep.subr.mxu0 0.0
  %596 = vmatpush2.msra.mxu0 0.0
  %597 = vmatprep.subr.mxu0 0.0
  %598 = vmatpush2.msra.mxu0 0.0
  %599 = vmatprep.subr.mxu0 0.0
  %600 = vmatpush2.msra.mxu0 0.0
  %601 = vmatprep.subr.mxu0 0.0
  %602 = vmatpush2.msra.mxu0 0.0
  %603 = vmatprep.subr.mxu0 0.0
  %604 = vmatpush2.msra.mxu0 0.0
  %605 = vmatprep.subr.mxu0 0.0
  %606 = vmatpush2.msra.mxu0 0.0
  %607 = vmatprep.subr.mxu0 0.0
  %608 = vmatpush2.msra.mxu0 0.0
  %609 = vmatprep.subr.mxu0 0.0
  %610 = vmatpush2.msra.mxu0 0.0
  %611 = vmatprep.subr.mxu0 0.0
  %612 = vmatpush2.msra.mxu0 0.0
  %613 = vmatprep.subr.mxu0 0.0
  %614 = vmatpush2.msra.mxu0 0.0
  %615 = vmatprep.subr.mxu0 0.0
  %616 = vmatpush2.msra.mxu0 0.0
  %617 = vmatprep.subr.mxu0 0.0
  %618 = vmatpush2.msra.mxu0 0.0
  %619 = vmatprep.subr.mxu0 0.0
  %620 = vmatpush2.msra.mxu0 0.0
  %621 = vmatprep.subr.mxu0 0.0
  %622 = vmatpush2.msra.mxu0 0.0
  %623 = vmatprep.subr.mxu0 0.0
  %624 = vmatpush2.msra.mxu0 0.0
  %625 = vmatprep.mubr.f32.mxu0 0.0
  %626 = vmatmul.mubr.f32.gmra.mxu0 %v547
  %v627 = vpop.f32.mrf.mxu0
  %v628 = vadd.f32 0.0, %v627
  %v629 = vpop.f32.mrf.mxu0
  %630 = vdwg.mxu0
  %v631 = vmul.f32 %v628, 0.001953125
  %632 = vmatprep.subr.mxu0 0.0
  %633 = vmatpush1.msra.mxu0 %v43
  %634 = vmatprep.subr.mxu0 0.0
  %635 = vmatpush1.msra.mxu0 %v42
  %636 = vmatprep.subr.mxu0 0.0
  %637 = vmatpush1.msra.mxu0 %v41
  %638 = vmatprep.subr.mxu0 0.0
  %639 = vmatpush1.msra.mxu0 %v40
  %640 = vmatprep.subr.mxu0 0.0
  %641 = vmatpush1.msra.mxu0 %v39
  %642 = vmatprep.subr.mxu0 0.0
  %643 = vmatpush1.msra.mxu0 %v38
  %644 = vmatprep.subr.mxu0 0.0
  %645 = vmatpush1.msra.mxu0 %v37
  %646 = vmatprep.subr.mxu0 0.0
  %647 = vmatpush1.msra.mxu0 %v36
  %648 = vmatprep.subr.mxu0 0.0
  %649 = vmatpush1.msra.mxu0 %v35
  %650 = vmatprep.subr.mxu0 0.0
  %651 = vmatpush1.msra.mxu0 %v34
  %652 = vmatprep.subr.mxu0 0.0
  %653 = vmatpush1.msra.mxu0 %v33
  %654 = vmatprep.subr.mxu0 0.0
  %655 = vmatpush1.msra.mxu0 %v32
  %656 = vmatprep.subr.mxu0 0.0
  %657 = vmatpush1.msra.mxu0 %v31
  %658 = vmatprep.subr.mxu0 0.0
  %659 = vmatpush1.msra.mxu0 %v30
  %660 = vmatprep.subr.mxu0 0.0
  %661 = vmatpush1.msra.mxu0 %v29
  %662 = vmatprep.subr.mxu0 0.0
  %663 = vmatpush1.msra.mxu0 %v28
  %664 = vmatprep.subr.mxu0 0.0
  %665 = vmatpush2.msra.mxu0 0.0
  %666 = vmatprep.subr.mxu0 0.0
  %667 = vmatpush2.msra.mxu0 0.0
  %668 = vmatprep.subr.mxu0 0.0
  %669 = vmatpush2.msra.mxu0 0.0
  %670 = vmatprep.subr.mxu0 0.0
  %671 = vmatpush2.msra.mxu0 0.0
  %672 = vmatprep.subr.mxu0 0.0
  %673 = vmatpush2.msra.mxu0 0.0
  %674 = vmatprep.subr.mxu0 0.0
  %675 = vmatpush2.msra.mxu0 0.0
  %676 = vmatprep.subr.mxu0 0.0
  %677 = vmatpush2.msra.mxu0 0.0
  %678 = vmatprep.subr.mxu0 0.0
  %679 = vmatpush2.msra.mxu0 0.0
  %680 = vmatprep.subr.mxu0 0.0
  %681 = vmatpush2.msra.mxu0 0.0
  %682 = vmatprep.subr.mxu0 0.0
  %683 = vmatpush2.msra.mxu0 0.0
  %684 = vmatprep.subr.mxu0 0.0
  %685 = vmatpush2.msra.mxu0 0.0
  %686 = vmatprep.subr.mxu0 0.0
  %687 = vmatpush2.msra.mxu0 0.0
  %688 = vmatprep.subr.mxu0 0.0
  %689 = vmatpush2.msra.mxu0 0.0
  %690 = vmatprep.subr.mxu0 0.0
  %691 = vmatpush2.msra.mxu0 0.0
  %692 = vmatprep.subr.mxu0 0.0
  %693 = vmatpush2.msra.mxu0 0.0
  %694 = vmatprep.subr.mxu0 0.0
  %695 = vmatpush2.msra.mxu0 0.0
  %696 = vmatprep.mubr.f32.mxu0 0.0
  %697 = vmatmul.mubr.f32.gmra.mxu0 %v560
  %v698 = vpop.f32.mrf.mxu0
  %v699 = vadd.f32 0.0, %v698
  %v700 = vpop.f32.mrf.mxu0
  %701 = vdwg.mxu0
  %v702 = vmul.f32 %v699, 0.001953125
  %v703 = vmul.f32 %v631, %v631
  %v704 = vsub.f32 %v702, %v703
  %v705 = vld [vmem:[%s3] sm:$0x1]
  %v706 = vadd.f32 %v704, 1e-05
  %v707 = vrsqrt.pop %v706
  %v708 = vmul.f32 %v705, %v707
  %v709 = vld [vmem:[%s4] sm:$0x1]
  %v710 = vmul.f32 %v631, %v708
  %v711 = vsub.f32 %v709, %v710
  %vm712 = vcmask 64512
  %v714 = vsel %vm712, %v708, 0
  %716 = vmatprep.subr.mxu0 0.0
  %717 = vmatpush1.msra.mxu0 0.0
  %718 = vmatprep.subr.mxu0 0.0
  %719 = vmatpush1.msra.mxu0 0.0
  %720 = vmatprep.subr.mxu0 0.0
  %721 = vmatpush1.msra.mxu0 0.0
  %722 = vmatprep.subr.mxu0 0.0
  %723 = vmatpush1.msra.mxu0 0.0
  %724 = vmatprep.subr.mxu0 0.0
  %725 = vmatpush1.msra.mxu0 0.0
  %726 = vmatprep.subr.mxu0 0.0
  %727 = vmatpush1.msra.mxu0 0.0
  %728 = vmatprep.subr.mxu0 0.0
  %729 = vmatpush1.msra.mxu0 0.0
  %730 = vmatprep.subr.mxu0 0.0
  %731 = vmatpush1.msra.mxu0 0.0
  %732 = vmatprep.subr.mxu0 0.0
  %733 = vmatpush1.msra.mxu0 0.0
  %734 = vmatprep.subr.mxu0 0.0
  %735 = vmatpush1.msra.mxu0 0.0
  %736 = vmatprep.subr.mxu0 0.0
  %737 = vmatpush1.msra.mxu0 0.0
  %738 = vmatprep.subr.mxu0 0.0
  %739 = vmatpush1.msra.mxu0 0.0
  %740 = vmatprep.subr.mxu0 0.0
  %741 = vmatpush1.msra.mxu0 0.0
  %742 = vmatprep.subr.mxu0 0.0
  %743 = vmatpush1.msra.mxu0 0.0
  %744 = vmatprep.subr.mxu0 0.0
  %745 = vmatpush1.msra.mxu0 0.0
  %746 = vmatprep.subr.mxu0 0.0
  %747 = vmatpush1.msra.mxu0 %v27
  %748 = vmatprep.subr.mxu0 0.0
  %749 = vmatpush2.msra.mxu0 0.0
  %750 = vmatprep.subr.mxu0 0.0
  %751 = vmatpush2.msra.mxu0 0.0
  %752 = vmatprep.subr.mxu0 0.0
  %753 = vmatpush2.msra.mxu0 0.0
  %754 = vmatprep.subr.mxu0 0.0
  %755 = vmatpush2.msra.mxu0 0.0
  %756 = vmatprep.subr.mxu0 0.0
  %757 = vmatpush2.msra.mxu0 0.0
  %758 = vmatprep.subr.mxu0 0.0
  %759 = vmatpush2.msra.mxu0 0.0
  %760 = vmatprep.subr.mxu0 0.0
  %761 = vmatpush2.msra.mxu0 0.0
  %762 = vmatprep.subr.mxu0 0.0
  %763 = vmatpush2.msra.mxu0 0.0
  %764 = vmatprep.subr.mxu0 0.0
  %765 = vmatpush2.msra.mxu0 0.0
  %766 = vmatprep.subr.mxu0 0.0
  %767 = vmatpush2.msra.mxu0 0.0
  %768 = vmatprep.subr.mxu0 0.0
  %769 = vmatpush2.msra.mxu0 0.0
  %770 = vmatprep.subr.mxu0 0.0
  %771 = vmatpush2.msra.mxu0 0.0
  %772 = vmatprep.subr.mxu0 0.0
  %773 = vmatpush2.msra.mxu0 0.0
  %774 = vmatprep.subr.mxu0 0.0
  %775 = vmatpush2.msra.mxu0 0.0
  %776 = vmatprep.subr.mxu0 0.0
  %777 = vmatpush2.msra.mxu0 0.0
  %778 = vmatprep.subr.mxu0 0.0
  %779 = vmatpush2.msra.mxu0 0.0
  %780 = vmatprep.mubr.f32.mxu0 0.0
  %781 = vmatmul.mubr.f32.gmra.mxu0 %v714
  %v782 = vpop.f32.mrf.mxu0
  %v783 = vadd.f32 0.0, %v782
  %v784 = vpop.f32.mrf.mxu0
  %785 = vdwg.mxu0
  %v787 = vsel %vm712, %v711, 0
  %789 = vmatprep.subr.mxu0 0.0
  %790 = vmatpush1.msra.mxu0 0.0
  %791 = vmatprep.subr.mxu0 0.0
  %792 = vmatpush1.msra.mxu0 0.0
  %793 = vmatprep.subr.mxu0 0.0
  %794 = vmatpush1.msra.mxu0 0.0
  %795 = vmatprep.subr.mxu0 0.0
  %796 = vmatpush1.msra.mxu0 0.0
  %797 = vmatprep.subr.mxu0 0.0
  %798 = vmatpush1.msra.mxu0 0.0
  %799 = vmatprep.subr.mxu0 0.0
  %800 = vmatpush1.msra.mxu0 0.0
  %801 = vmatprep.subr.mxu0 0.0
  %802 = vmatpush1.msra.mxu0 0.0
  %803 = vmatprep.subr.mxu0 0.0
  %804 = vmatpush1.msra.mxu0 0.0
  %805 = vmatprep.subr.mxu0 0.0
  %806 = vmatpush1.msra.mxu0 0.0
  %807 = vmatprep.subr.mxu0 0.0
  %808 = vmatpush1.msra.mxu0 0.0
  %809 = vmatprep.subr.mxu0 0.0
  %810 = vmatpush1.msra.mxu0 0.0
  %811 = vmatprep.subr.mxu0 0.0
  %812 = vmatpush1.msra.mxu0 0.0
  %813 = vmatprep.subr.mxu0 0.0
  %814 = vmatpush1.msra.mxu0 0.0
  %815 = vmatprep.subr.mxu0 0.0
  %816 = vmatpush1.msra.mxu0 0.0
  %817 = vmatprep.subr.mxu0 0.0
  %818 = vmatpush1.msra.mxu0 0.0
  %819 = vmatprep.subr.mxu0 0.0
  %820 = vmatpush1.msra.mxu0 %v27
  %821 = vmatprep.subr.mxu0 0.0
  %822 = vmatpush2.msra.mxu0 0.0
  %823 = vmatprep.subr.mxu0 0.0
  %824 = vmatpush2.msra.mxu0 0.0
  %825 = vmatprep.subr.mxu0 0.0
  %826 = vmatpush2.msra.mxu0 0.0
  %827 = vmatprep.subr.mxu0 0.0
  %828 = vmatpush2.msra.mxu0 0.0
  %829 = vmatprep.subr.mxu0 0.0
  %830 = vmatpush2.msra.mxu0 0.0
  %831 = vmatprep.subr.mxu0 0.0
  %832 = vmatpush2.msra.mxu0 0.0
  %833 = vmatprep.subr.mxu0 0.0
  %834 = vmatpush2.msra.mxu0 0.0
  %835 = vmatprep.subr.mxu0 0.0
  %836 = vmatpush2.msra.mxu0 0.0
  %837 = vmatprep.subr.mxu0 0.0
  %838 = vmatpush2.msra.mxu0 0.0
  %839 = vmatprep.subr.mxu0 0.0
  %840 = vmatpush2.msra.mxu0 0.0
  %841 = vmatprep.subr.mxu0 0.0
  %842 = vmatpush2.msra.mxu0 0.0
  %843 = vmatprep.subr.mxu0 0.0
  %844 = vmatpush2.msra.mxu0 0.0
  %845 = vmatprep.subr.mxu0 0.0
  %846 = vmatpush2.msra.mxu0 0.0
  %847 = vmatprep.subr.mxu0 0.0
  %848 = vmatpush2.msra.mxu0 0.0
  %849 = vmatprep.subr.mxu0 0.0
  %850 = vmatpush2.msra.mxu0 0.0
  %851 = vmatprep.subr.mxu0 0.0
  %852 = vmatpush2.msra.mxu0 0.0
  %853 = vmatprep.mubr.f32.mxu0 0.0
  %854 = vmatmul.mubr.f32.gmra.mxu0 %v787
  %v855 = vpop.f32.mrf.mxu0
  %v856 = vadd.f32 0.0, %v855
  %v857 = vpop.f32.mrf.mxu0
  %858 = vdwg.mxu0
  %v859 = vlaneseq
  %v860 = vshrl.u32 %v859, 7
  %v861 = vsub.s32 0, %v860
  %v862 = vrot.slane %v783, %v861
  %v863 = vmul.f32 %v535, %v862
  %v864 = vmul.f32 %v536, %v862
  %v865 = vmul.f32 %v537, %v862
  %v866 = vmul.f32 %v538, %v862
  %v867 = vlaneseq
  %v868 = vshrl.u32 %v867, 7
  %v869 = vsub.s32 0, %v868
  %v870 = vrot.slane %v856, %v869
  %v871 = vadd.f32 %v863, %v870
  %v872 = vadd.f32 %v864, %v870
  %v873 = vadd.f32 %v865, %v870
  %v874 = vadd.f32 %v866, %v870
  %v875 = vmax.f32 %v871, 0.0
  %v876 = vmax.f32 %v872, 0.0
  %v877 = vmax.f32 %v873, 0.0
  %v878 = vmax.f32 %v874, 0.0
  %v879 = vpack.c.bf16 %v876, %v875
  %v880 = vpack.c.bf16 %v878, %v877
  %881 = vmatprep.subr.bf16.mxu0 0
  %882 = vmatpush1.bf16.msra.mxu0 0
  %883 = vmatprep.subr.bf16.mxu0 0
  %884 = vmatpush1.bf16.msra.mxu0 0
  %885 = vmatprep.subr.bf16.mxu0 0
  %886 = vmatpush1.bf16.msra.mxu0 0
  %887 = vmatprep.subr.bf16.mxu0 0
  %888 = vmatpush1.bf16.msra.mxu0 0
  %889 = vmatprep.subr.bf16.mxu0 0
  %890 = vmatpush1.bf16.msra.mxu0 0
  %891 = vmatprep.subr.bf16.mxu0 0
  %892 = vmatpush1.bf16.msra.mxu0 0
  %893 = vmatprep.subr.bf16.mxu0 0
  %894 = vmatpush1.bf16.msra.mxu0 %v880
  %895 = vmatprep.subr.bf16.mxu0 0
  %896 = vmatpush1.bf16.msra.mxu0 %v879
  %897 = vmatprep.subr.bf16.mxu0 0
  %898 = vmatpush2.bf16.msra.mxu0 0
  %899 = vmatprep.subr.bf16.mxu0 0
  %900 = vmatpush2.bf16.msra.mxu0 0
  %901 = vmatprep.subr.bf16.mxu0 0
  %902 = vmatpush2.bf16.msra.mxu0 0
  %903 = vmatprep.subr.bf16.mxu0 0
  %904 = vmatpush2.bf16.msra.mxu0 0
  %905 = vmatprep.subr.bf16.mxu0 0
  %906 = vmatpush2.bf16.msra.mxu0 0
  %907 = vmatprep.subr.bf16.mxu0 0
  %908 = vmatpush2.bf16.msra.mxu0 0
  %909 = vmatprep.subr.bf16.mxu0 0
  %910 = vmatpush2.bf16.msra.mxu0 0
  %911 = vmatprep.subr.bf16.mxu0 0
  %912 = vmatpush2.bf16.msra.mxu0 0
  %913 = vmatprep.mubr.bf16.mxu0 0
  %914 = vmatmul.mubr.bf16.gmra.mxu0 %v71
  %v915 = vpop.f32.mrf.mxu0
  %v916 = vadd.f32 0.0, %v915
  %v917 = vpop.f32.mrf.mxu0
  %v918 = vpop.f32.mrf.mxu0
  %v919 = vadd.f32 0.0, %v918
  %v920 = vpop.f32.mrf.mxu0
  %921 = vmatprep.mubr.bf16.mxu0 0
  %922 = vmatmul.mubr.bf16.gmra.mxu0 %v74
  %v923 = vpop.f32.mrf.mxu0
  %v924 = vadd.f32 0.0, %v923
  %v925 = vpop.f32.mrf.mxu0
  %v926 = vpop.f32.mrf.mxu0
  %v927 = vadd.f32 0.0, %v926
  %v928 = vpop.f32.mrf.mxu0
  %929 = vdwg.mxu0
  %v930 = vpack.c.bf16 %v919, %v916
  %v931 = vpack.c.bf16 %v927, %v924
  %932 = vmatprep.subr.bf16.mxu0 0
  %933 = vmatpush1.bf16.msra.mxu0 0
  %934 = vmatprep.subr.bf16.mxu0 0
  %935 = vmatpush1.bf16.msra.mxu0 0
  %936 = vmatprep.subr.bf16.mxu0 0
  %937 = vmatpush1.bf16.msra.mxu0 0
  %938 = vmatprep.subr.bf16.mxu0 0
  %939 = vmatpush1.bf16.msra.mxu0 0
  %940 = vmatprep.subr.bf16.mxu0 0
  %941 = vmatpush1.bf16.msra.mxu0 0
  %942 = vmatprep.subr.bf16.mxu0 0
  %943 = vmatpush1.bf16.msra.mxu0 0
  %944 = vmatprep.subr.bf16.mxu0 0
  %945 = vmatpush1.bf16.msra.mxu0 %v880
  %946 = vmatprep.subr.bf16.mxu0 0
  %947 = vmatpush1.bf16.msra.mxu0 %v879
  %948 = vmatprep.subr.bf16.mxu0 0
  %949 = vmatpush2.bf16.msra.mxu0 0
  %950 = vmatprep.subr.bf16.mxu0 0
  %951 = vmatpush2.bf16.msra.mxu0 0
  %952 = vmatprep.subr.bf16.mxu0 0
  %953 = vmatpush2.bf16.msra.mxu0 0
  %954 = vmatprep.subr.bf16.mxu0 0
  %955 = vmatpush2.bf16.msra.mxu0 0
  %956 = vmatprep.subr.bf16.mxu0 0
  %957 = vmatpush2.bf16.msra.mxu0 0
  %958 = vmatprep.subr.bf16.mxu0 0
  %959 = vmatpush2.bf16.msra.mxu0 0
  %960 = vmatprep.subr.bf16.mxu0 0
  %961 = vmatpush2.bf16.msra.mxu0 0
  %962 = vmatprep.subr.bf16.mxu0 0
  %963 = vmatpush2.bf16.msra.mxu0 0
  %964 = vmatprep.mubr.bf16.mxu0 0
  %965 = vmatmul.mubr.bf16.gmra.mxu0 %v138
  %v966 = vpop.f32.mrf.mxu0
  %v967 = vadd.f32 0.0, %v966
  %v968 = vpop.f32.mrf.mxu0
  %v969 = vpop.f32.mrf.mxu0
  %v970 = vadd.f32 0.0, %v969
  %v971 = vpop.f32.mrf.mxu0
  %972 = vmatprep.mubr.bf16.mxu0 0
  %973 = vmatmul.mubr.bf16.gmra.mxu0 %v141
  %v974 = vpop.f32.mrf.mxu0
  %v975 = vadd.f32 0.0, %v974
  %v976 = vpop.f32.mrf.mxu0
  %v977 = vpop.f32.mrf.mxu0
  %v978 = vadd.f32 0.0, %v977
  %v979 = vpop.f32.mrf.mxu0
  %980 = vdwg.mxu0
  %v981 = vpack.c.bf16 %v970, %v967
  %v982 = vpack.c.bf16 %v978, %v975
  %s983 = scalar_lea.vmem %s1, 192
  %v984 = vld [vmem:[%s983] sm:$0xf]
  %v985 = vld [vmem:[%s983 + $0x4] sm:$0xf]
  %v986 = vld [vmem:[%s983 + $0x8] sm:$0xf]
  %v987 = vld [vmem:[%s983 + $0xc] sm:$0xf]
  %v988 = vld [vmem:[%s983 + $0x10] sm:$0xf]
  %v989 = vld [vmem:[%s983 + $0x14] sm:$0xf]
  %v990 = vld [vmem:[%s983 + $0x18] sm:$0xf]
  %v991 = vld [vmem:[%s983 + $0x1c] sm:$0xf]
  %v992 = vld [vmem:[%s983 + $0x20] sm:$0xf]
  %v993 = vld [vmem:[%s983 + $0x24] sm:$0xf]
  %v994 = vld [vmem:[%s983 + $0x28] sm:$0xf]
  %v995 = vld [vmem:[%s983 + $0x2c] sm:$0xf]
  %v996 = vld [vmem:[%s983 + $0x30] sm:$0xf]
  %v997 = vld [vmem:[%s983 + $0x34] sm:$0xf]
  %v998 = vld [vmem:[%s983 + $0x38] sm:$0xf]
  %v999 = vld [vmem:[%s983 + $0x3c] sm:$0xf]
  %s1000 = scalar_lea.vmem %s1, 256
  %v1001 = vld [vmem:[%s1000] sm:$0xf]
  %v1002 = vld [vmem:[%s1000 + $0x4] sm:$0xf]
  %v1003 = vld [vmem:[%s1000 + $0x8] sm:$0xf]
  %v1004 = vld [vmem:[%s1000 + $0xc] sm:$0xf]
  %v1005 = vld [vmem:[%s1000 + $0x10] sm:$0xf]
  %v1006 = vld [vmem:[%s1000 + $0x14] sm:$0xf]
  %v1007 = vld [vmem:[%s1000 + $0x18] sm:$0xf]
  %v1008 = vld [vmem:[%s1000 + $0x1c] sm:$0xf]
  %v1009 = vld [vmem:[%s1000 + $0x20] sm:$0xf]
  %v1010 = vld [vmem:[%s1000 + $0x24] sm:$0xf]
  %v1011 = vld [vmem:[%s1000 + $0x28] sm:$0xf]
  %v1012 = vld [vmem:[%s1000 + $0x2c] sm:$0xf]
  %v1013 = vld [vmem:[%s1000 + $0x30] sm:$0xf]
  %v1014 = vld [vmem:[%s1000 + $0x34] sm:$0xf]
  %v1015 = vld [vmem:[%s1000 + $0x38] sm:$0xf]
  %v1016 = vld [vmem:[%s1000 + $0x3c] sm:$0xf]
  %v1033 = vunpack.c.l.b16 %v1001
  %v1034 = vunpack.c.l.b16 %v1002
  %v1035 = vunpack.c.l.b16 %v1003
  %v1036 = vunpack.c.l.b16 %v1004
  %v1037 = vunpack.c.l.b16 %v1005
  %v1038 = vunpack.c.l.b16 %v1006
  %v1039 = vunpack.c.l.b16 %v1007
  %v1040 = vunpack.c.l.b16 %v1008
  %v1041 = vunpack.c.l.b16 %v1009
  %v1042 = vunpack.c.l.b16 %v1010
  %v1043 = vunpack.c.l.b16 %v1011
  %v1044 = vunpack.c.l.b16 %v1012
  %v1045 = vunpack.c.l.b16 %v1013
  %v1046 = vunpack.c.l.b16 %v1014
  %v1047 = vunpack.c.l.b16 %v1015
  %v1048 = vunpack.c.l.b16 %v1016
  %v1049 = vpack.c.b16 %v1034, %v1033
  %v1050 = vpack.c.b16 %v1036, %v1035
  %v1051 = vpack.c.b16 %v1038, %v1037
  %v1052 = vpack.c.b16 %v1040, %v1039
  %v1053 = vpack.c.b16 %v1042, %v1041
  %v1054 = vpack.c.b16 %v1044, %v1043
  %v1055 = vpack.c.b16 %v1046, %v1045
  %v1056 = vpack.c.b16 %v1048, %v1047
  %1065 = vmatprep.subr.bf16.mxu0 0
  %1066 = vmatpush1.bf16.msra.mxu0 %v1056
  %1067 = vmatprep.subr.bf16.mxu0 0
  %1068 = vmatpush1.bf16.msra.mxu0 %v1055
  %1069 = vmatprep.subr.bf16.mxu0 0
  %1070 = vmatpush1.bf16.msra.mxu0 %v1054
  %1071 = vmatprep.subr.bf16.mxu0 0
  %1072 = vmatpush1.bf16.msra.mxu0 %v1053
  %1073 = vmatprep.subr.bf16.mxu0 0
  %1074 = vmatpush1.bf16.msra.mxu0 %v1052
  %1075 = vmatprep.subr.bf16.mxu0 0
  %1076 = vmatpush1.bf16.msra.mxu0 %v1051
  %1077 = vmatprep.subr.bf16.mxu0 0
  %1078 = vmatpush1.bf16.msra.mxu0 %v1050
  %1079 = vmatprep.subr.bf16.mxu0 0
  %1080 = vmatpush1.bf16.msra.mxu0 %v1049
  %1081 = vmatprep.subr.bf16.mxu0 0
  %1082 = vmatpush2.bf16.msra.mxu0 0
  %1083 = vmatprep.subr.bf16.mxu0 0
  %1084 = vmatpush2.bf16.msra.mxu0 0
  %1085 = vmatprep.subr.bf16.mxu0 0
  %1086 = vmatpush2.bf16.msra.mxu0 0
  %1087 = vmatprep.subr.bf16.mxu0 0
  %1088 = vmatpush2.bf16.msra.mxu0 0
  %1089 = vmatprep.subr.bf16.mxu0 0
  %1090 = vmatpush2.bf16.msra.mxu0 0
  %1091 = vmatprep.subr.bf16.mxu0 0
  %1092 = vmatpush2.bf16.msra.mxu0 0
  %1093 = vmatprep.subr.bf16.mxu0 0
  %1094 = vmatpush2.bf16.msra.mxu0 0
  %1095 = vmatprep.subr.bf16.mxu0 0
  %1096 = vmatpush2.bf16.msra.mxu0 0
  %1097 = vmatprep.mubr.bf16.mxu0 0
  %1098 = vmatmul.mubr.bf16.gmra.mxu0 %v879
  %v1099 = vpop.f32.mrf.mxu0
  %v1100 = vadd.f32 0.0, %v1099
  %v1101 = vpop.f32.mrf.mxu0
  %v1102 = vpop.f32.mrf.mxu0
  %v1103 = vadd.f32 0.0, %v1102
  %v1104 = vpop.f32.mrf.mxu0
  %1105 = vmatprep.mubr.bf16.mxu0 0
  %1106 = vmatmul.mubr.bf16.gmra.mxu0 %v880
  %v1107 = vpop.f32.mrf.mxu0
  %v1108 = vadd.f32 0.0, %v1107
  %v1109 = vpop.f32.mrf.mxu0
  %v1110 = vpop.f32.mrf.mxu0
  %v1111 = vadd.f32 0.0, %v1110
  %v1112 = vpop.f32.mrf.mxu0
  %1113 = vdwg.mxu0
  %v1130 = vunpack.c.l.b16 %v984
  %v1131 = vunpack.c.l.b16 %v985
  %v1132 = vunpack.c.l.b16 %v986
  %v1133 = vunpack.c.l.b16 %v987
  %v1134 = vunpack.c.l.b16 %v988
  %v1135 = vunpack.c.l.b16 %v989
  %v1136 = vunpack.c.l.b16 %v990
  %v1137 = vunpack.c.l.b16 %v991
  %v1138 = vunpack.c.l.b16 %v992
  %v1139 = vunpack.c.l.b16 %v993
  %v1140 = vunpack.c.l.b16 %v994
  %v1141 = vunpack.c.l.b16 %v995
  %v1142 = vunpack.c.l.b16 %v996
  %v1143 = vunpack.c.l.b16 %v997
  %v1144 = vunpack.c.l.b16 %v998
  %v1145 = vunpack.c.l.b16 %v999
  %v1146 = vpack.c.b16 %v1131, %v1130
  %v1147 = vpack.c.b16 %v1133, %v1132
  %v1148 = vpack.c.b16 %v1135, %v1134
  %v1149 = vpack.c.b16 %v1137, %v1136
  %v1150 = vpack.c.b16 %v1139, %v1138
  %v1151 = vpack.c.b16 %v1141, %v1140
  %v1152 = vpack.c.b16 %v1143, %v1142
  %v1153 = vpack.c.b16 %v1145, %v1144
  %1162 = vmatprep.subr.bf16.mxu0 0
  %1163 = vmatpush1.bf16.msra.mxu0 %v1153
  %1164 = vmatprep.subr.bf16.mxu0 0
  %1165 = vmatpush1.bf16.msra.mxu0 %v1152
  %1166 = vmatprep.subr.bf16.mxu0 0
  %1167 = vmatpush1.bf16.msra.mxu0 %v1151
  %1168 = vmatprep.subr.bf16.mxu0 0
  %1169 = vmatpush1.bf16.msra.mxu0 %v1150
  %1170 = vmatprep.subr.bf16.mxu0 0
  %1171 = vmatpush1.bf16.msra.mxu0 %v1149
  %1172 = vmatprep.subr.bf16.mxu0 0
  %1173 = vmatpush1.bf16.msra.mxu0 %v1148
  %1174 = vmatprep.subr.bf16.mxu0 0
  %1175 = vmatpush1.bf16.msra.mxu0 %v1147
  %1176 = vmatprep.subr.bf16.mxu0 0
  %1177 = vmatpush1.bf16.msra.mxu0 %v1146
  %1178 = vmatprep.subr.bf16.mxu0 0
  %1179 = vmatpush2.bf16.msra.mxu0 0
  %1180 = vmatprep.subr.bf16.mxu0 0
  %1181 = vmatpush2.bf16.msra.mxu0 0
  %1182 = vmatprep.subr.bf16.mxu0 0
  %1183 = vmatpush2.bf16.msra.mxu0 0
  %1184 = vmatprep.subr.bf16.mxu0 0
  %1185 = vmatpush2.bf16.msra.mxu0 0
  %1186 = vmatprep.subr.bf16.mxu0 0
  %1187 = vmatpush2.bf16.msra.mxu0 0
  %1188 = vmatprep.subr.bf16.mxu0 0
  %1189 = vmatpush2.bf16.msra.mxu0 0
  %1190 = vmatprep.subr.bf16.mxu0 0
  %1191 = vmatpush2.bf16.msra.mxu0 0
  %1192 = vmatprep.subr.bf16.mxu0 0
  %1193 = vmatpush2.bf16.msra.mxu0 0
  %1194 = vmatprep.mubr.bf16.mxu0 0
  %1195 = vmatmul.mubr.bf16.gmra.mxu0 %v930
  %v1196 = vpop.f32.mrf.mxu0
  %v1197 = vadd.f32 %v1100, %v1196
  %v1198 = vpop.f32.mrf.mxu0
  %v1199 = vpop.f32.mrf.mxu0
  %v1200 = vadd.f32 %v1103, %v1199
  %v1201 = vpop.f32.mrf.mxu0
  %1202 = vmatprep.mubr.bf16.mxu0 0
  %1203 = vmatmul.mubr.bf16.gmra.mxu0 %v931
  %v1204 = vpop.f32.mrf.mxu0
  %v1205 = vadd.f32 %v1108, %v1204
  %v1206 = vpop.f32.mrf.mxu0
  %v1207 = vpop.f32.mrf.mxu0
  %v1208 = vadd.f32 %v1111, %v1207
  %v1209 = vpop.f32.mrf.mxu0
  %1210 = vdwg.mxu0
  %s1211 = scalar_lea.vmem %s1, 320
  %v1212 = vld [vmem:[%s1211] sm:$0xf]
  %v1213 = vld [vmem:[%s1211 + $0x4] sm:$0xf]
  %v1214 = vld [vmem:[%s1211 + $0x8] sm:$0xf]
  %v1215 = vld [vmem:[%s1211 + $0xc] sm:$0xf]
  %v1216 = vld [vmem:[%s1211 + $0x10] sm:$0xf]
  %v1217 = vld [vmem:[%s1211 + $0x14] sm:$0xf]
  %v1218 = vld [vmem:[%s1211 + $0x18] sm:$0xf]
  %v1219 = vld [vmem:[%s1211 + $0x1c] sm:$0xf]
  %v1220 = vld [vmem:[%s1211 + $0x20] sm:$0xf]
  %v1221 = vld [vmem:[%s1211 + $0x24] sm:$0xf]
  %v1222 = vld [vmem:[%s1211 + $0x28] sm:$0xf]
  %v1223 = vld [vmem:[%s1211 + $0x2c] sm:$0xf]
  %v1224 = vld [vmem:[%s1211 + $0x30] sm:$0xf]
  %v1225 = vld [vmem:[%s1211 + $0x34] sm:$0xf]
  %v1226 = vld [vmem:[%s1211 + $0x38] sm:$0xf]
  %v1227 = vld [vmem:[%s1211 + $0x3c] sm:$0xf]
  %v1244 = vunpack.c.l.b16 %v1212
  %v1245 = vunpack.c.l.b16 %v1213
  %v1246 = vunpack.c.l.b16 %v1214
  %v1247 = vunpack.c.l.b16 %v1215
  %v1248 = vunpack.c.l.b16 %v1216
  %v1249 = vunpack.c.l.b16 %v1217
  %v1250 = vunpack.c.l.b16 %v1218
  %v1251 = vunpack.c.l.b16 %v1219
  %v1252 = vunpack.c.l.b16 %v1220
  %v1253 = vunpack.c.l.b16 %v1221
  %v1254 = vunpack.c.l.b16 %v1222
  %v1255 = vunpack.c.l.b16 %v1223
  %v1256 = vunpack.c.l.b16 %v1224
  %v1257 = vunpack.c.l.b16 %v1225
  %v1258 = vunpack.c.l.b16 %v1226
  %v1259 = vunpack.c.l.b16 %v1227
  %v1260 = vpack.c.b16 %v1245, %v1244
  %v1261 = vpack.c.b16 %v1247, %v1246
  %v1262 = vpack.c.b16 %v1249, %v1248
  %v1263 = vpack.c.b16 %v1251, %v1250
  %v1264 = vpack.c.b16 %v1253, %v1252
  %v1265 = vpack.c.b16 %v1255, %v1254
  %v1266 = vpack.c.b16 %v1257, %v1256
  %v1267 = vpack.c.b16 %v1259, %v1258
  %1276 = vmatprep.subr.bf16.mxu0 0
  %1277 = vmatpush1.bf16.msra.mxu0 %v1267
  %1278 = vmatprep.subr.bf16.mxu0 0
  %1279 = vmatpush1.bf16.msra.mxu0 %v1266
  %1280 = vmatprep.subr.bf16.mxu0 0
  %1281 = vmatpush1.bf16.msra.mxu0 %v1265
  %1282 = vmatprep.subr.bf16.mxu0 0
  %1283 = vmatpush1.bf16.msra.mxu0 %v1264
  %1284 = vmatprep.subr.bf16.mxu0 0
  %1285 = vmatpush1.bf16.msra.mxu0 %v1263
  %1286 = vmatprep.subr.bf16.mxu0 0
  %1287 = vmatpush1.bf16.msra.mxu0 %v1262
  %1288 = vmatprep.subr.bf16.mxu0 0
  %1289 = vmatpush1.bf16.msra.mxu0 %v1261
  %1290 = vmatprep.subr.bf16.mxu0 0
  %1291 = vmatpush1.bf16.msra.mxu0 %v1260
  %1292 = vmatprep.subr.bf16.mxu0 0
  %1293 = vmatpush2.bf16.msra.mxu0 0
  %1294 = vmatprep.subr.bf16.mxu0 0
  %1295 = vmatpush2.bf16.msra.mxu0 0
  %1296 = vmatprep.subr.bf16.mxu0 0
  %1297 = vmatpush2.bf16.msra.mxu0 0
  %1298 = vmatprep.subr.bf16.mxu0 0
  %1299 = vmatpush2.bf16.msra.mxu0 0
  %1300 = vmatprep.subr.bf16.mxu0 0
  %1301 = vmatpush2.bf16.msra.mxu0 0
  %1302 = vmatprep.subr.bf16.mxu0 0
  %1303 = vmatpush2.bf16.msra.mxu0 0
  %1304 = vmatprep.subr.bf16.mxu0 0
  %1305 = vmatpush2.bf16.msra.mxu0 0
  %1306 = vmatprep.subr.bf16.mxu0 0
  %1307 = vmatpush2.bf16.msra.mxu0 0
  %1308 = vmatprep.mubr.bf16.mxu0 0
  %1309 = vmatmul.mubr.bf16.gmra.mxu0 %v981
  %v1310 = vpop.f32.mrf.mxu0
  %v1311 = vadd.f32 0.0, %v1310
  %v1312 = vpop.f32.mrf.mxu0
  %v1313 = vpop.f32.mrf.mxu0
  %v1314 = vadd.f32 0.0, %v1313
  %v1315 = vpop.f32.mrf.mxu0
  %1316 = vmatprep.mubr.bf16.mxu0 0
  %1317 = vmatmul.mubr.bf16.gmra.mxu0 %v982
  %v1318 = vpop.f32.mrf.mxu0
  %v1319 = vadd.f32 0.0, %v1318
  %v1320 = vpop.f32.mrf.mxu0
  %v1321 = vpop.f32.mrf.mxu0
  %v1322 = vadd.f32 0.0, %v1321
  %v1323 = vpop.f32.mrf.mxu0
  %1324 = vdwg.mxu0
  %v1325 = vadd.f32 %v1197, %v1311
  %v1326 = vadd.f32 %v1200, %v1314
  %v1327 = vadd.f32 %v1205, %v1319
  %v1328 = vadd.f32 %v1208, %v1322
  %v1329 = vadd.f32 %v1325, %v1326
  %v1330 = vadd.f32 %v1329, %v1327
  %v1331 = vadd.f32 %v1330, %v1328
  %v1332 = vrot.slane %v1331, 4
  %v1333 = vadd.f32 %v1331, %v1332
  %v1334 = vrot.slane %v1333, 2
  %v1335 = vadd.f32 %v1333, %v1334
  %v1336 = vrot.slane %v1335, 1
  %v1337 = vadd.f32 %v1335, %v1336
  %v1338 = vmul.f32 %v1325, %v1325
  %v1339 = vmul.f32 %v1326, %v1326
  %v1340 = vmul.f32 %v1327, %v1327
  %v1341 = vmul.f32 %v1328, %v1328
  %v1342 = vadd.f32 %v1338, %v1339
  %v1343 = vadd.f32 %v1342, %v1340
  %v1344 = vadd.f32 %v1343, %v1341
  %v1345 = vrot.slane %v1344, 4
  %v1346 = vadd.f32 %v1344, %v1345
  %v1347 = vrot.slane %v1346, 2
  %v1348 = vadd.f32 %v1346, %v1347
  %v1349 = vrot.slane %v1348, 1
  %v1350 = vadd.f32 %v1348, %v1349
  %1351 = vmatprep.subr.mxu0 0.0
  %1352 = vmatpush1.msra.mxu0 %v43
  %1353 = vmatprep.subr.mxu0 0.0
  %1354 = vmatpush1.msra.mxu0 %v42
  %1355 = vmatprep.subr.mxu0 0.0
  %1356 = vmatpush1.msra.mxu0 %v41
  %1357 = vmatprep.subr.mxu0 0.0
  %1358 = vmatpush1.msra.mxu0 %v40
  %1359 = vmatprep.subr.mxu0 0.0
  %1360 = vmatpush1.msra.mxu0 %v39
  %1361 = vmatprep.subr.mxu0 0.0
  %1362 = vmatpush1.msra.mxu0 %v38
  %1363 = vmatprep.subr.mxu0 0.0
  %1364 = vmatpush1.msra.mxu0 %v37
  %1365 = vmatprep.subr.mxu0 0.0
  %1366 = vmatpush1.msra.mxu0 %v36
  %1367 = vmatprep.subr.mxu0 0.0
  %1368 = vmatpush1.msra.mxu0 %v35
  %1369 = vmatprep.subr.mxu0 0.0
  %1370 = vmatpush1.msra.mxu0 %v34
  %1371 = vmatprep.subr.mxu0 0.0
  %1372 = vmatpush1.msra.mxu0 %v33
  %1373 = vmatprep.subr.mxu0 0.0
  %1374 = vmatpush1.msra.mxu0 %v32
  %1375 = vmatprep.subr.mxu0 0.0
  %1376 = vmatpush1.msra.mxu0 %v31
  %1377 = vmatprep.subr.mxu0 0.0
  %1378 = vmatpush1.msra.mxu0 %v30
  %1379 = vmatprep.subr.mxu0 0.0
  %1380 = vmatpush1.msra.mxu0 %v29
  %1381 = vmatprep.subr.mxu0 0.0
  %1382 = vmatpush1.msra.mxu0 %v28
  %1383 = vmatprep.subr.mxu0 0.0
  %1384 = vmatpush2.msra.mxu0 0.0
  %1385 = vmatprep.subr.mxu0 0.0
  %1386 = vmatpush2.msra.mxu0 0.0
  %1387 = vmatprep.subr.mxu0 0.0
  %1388 = vmatpush2.msra.mxu0 0.0
  %1389 = vmatprep.subr.mxu0 0.0
  %1390 = vmatpush2.msra.mxu0 0.0
  %1391 = vmatprep.subr.mxu0 0.0
  %1392 = vmatpush2.msra.mxu0 0.0
  %1393 = vmatprep.subr.mxu0 0.0
  %1394 = vmatpush2.msra.mxu0 0.0
  %1395 = vmatprep.subr.mxu0 0.0
  %1396 = vmatpush2.msra.mxu0 0.0
  %1397 = vmatprep.subr.mxu0 0.0
  %1398 = vmatpush2.msra.mxu0 0.0
  %1399 = vmatprep.subr.mxu0 0.0
  %1400 = vmatpush2.msra.mxu0 0.0
  %1401 = vmatprep.subr.mxu0 0.0
  %1402 = vmatpush2.msra.mxu0 0.0
  %1403 = vmatprep.subr.mxu0 0.0
  %1404 = vmatpush2.msra.mxu0 0.0
  %1405 = vmatprep.subr.mxu0 0.0
  %1406 = vmatpush2.msra.mxu0 0.0
  %1407 = vmatprep.subr.mxu0 0.0
  %1408 = vmatpush2.msra.mxu0 0.0
  %1409 = vmatprep.subr.mxu0 0.0
  %1410 = vmatpush2.msra.mxu0 0.0
  %1411 = vmatprep.subr.mxu0 0.0
  %1412 = vmatpush2.msra.mxu0 0.0
  %1413 = vmatprep.subr.mxu0 0.0
  %1414 = vmatpush2.msra.mxu0 0.0
  %1415 = vmatprep.mubr.f32.mxu0 0.0
  %1416 = vmatmul.mubr.f32.gmra.mxu0 %v1337
  %v1417 = vpop.f32.mrf.mxu0
  %v1418 = vadd.f32 0.0, %v1417
  %v1419 = vpop.f32.mrf.mxu0
  %1420 = vdwg.mxu0
  %v1421 = vmul.f32 %v1418, 0.001953125
  %1422 = vmatprep.subr.mxu0 0.0
  %1423 = vmatpush1.msra.mxu0 %v43
  %1424 = vmatprep.subr.mxu0 0.0
  %1425 = vmatpush1.msra.mxu0 %v42
  %1426 = vmatprep.subr.mxu0 0.0
  %1427 = vmatpush1.msra.mxu0 %v41
  %1428 = vmatprep.subr.mxu0 0.0
  %1429 = vmatpush1.msra.mxu0 %v40
  %1430 = vmatprep.subr.mxu0 0.0
  %1431 = vmatpush1.msra.mxu0 %v39
  %1432 = vmatprep.subr.mxu0 0.0
  %1433 = vmatpush1.msra.mxu0 %v38
  %1434 = vmatprep.subr.mxu0 0.0
  %1435 = vmatpush1.msra.mxu0 %v37
  %1436 = vmatprep.subr.mxu0 0.0
  %1437 = vmatpush1.msra.mxu0 %v36
  %1438 = vmatprep.subr.mxu0 0.0
  %1439 = vmatpush1.msra.mxu0 %v35
  %1440 = vmatprep.subr.mxu0 0.0
  %1441 = vmatpush1.msra.mxu0 %v34
  %1442 = vmatprep.subr.mxu0 0.0
  %1443 = vmatpush1.msra.mxu0 %v33
  %1444 = vmatprep.subr.mxu0 0.0
  %1445 = vmatpush1.msra.mxu0 %v32
  %1446 = vmatprep.subr.mxu0 0.0
  %1447 = vmatpush1.msra.mxu0 %v31
  %1448 = vmatprep.subr.mxu0 0.0
  %1449 = vmatpush1.msra.mxu0 %v30
  %1450 = vmatprep.subr.mxu0 0.0
  %1451 = vmatpush1.msra.mxu0 %v29
  %1452 = vmatprep.subr.mxu0 0.0
  %1453 = vmatpush1.msra.mxu0 %v28
  %1454 = vmatprep.subr.mxu0 0.0
  %1455 = vmatpush2.msra.mxu0 0.0
  %1456 = vmatprep.subr.mxu0 0.0
  %1457 = vmatpush2.msra.mxu0 0.0
  %1458 = vmatprep.subr.mxu0 0.0
  %1459 = vmatpush2.msra.mxu0 0.0
  %1460 = vmatprep.subr.mxu0 0.0
  %1461 = vmatpush2.msra.mxu0 0.0
  %1462 = vmatprep.subr.mxu0 0.0
  %1463 = vmatpush2.msra.mxu0 0.0
  %1464 = vmatprep.subr.mxu0 0.0
  %1465 = vmatpush2.msra.mxu0 0.0
  %1466 = vmatprep.subr.mxu0 0.0
  %1467 = vmatpush2.msra.mxu0 0.0
  %1468 = vmatprep.subr.mxu0 0.0
  %1469 = vmatpush2.msra.mxu0 0.0
  %1470 = vmatprep.subr.mxu0 0.0
  %1471 = vmatpush2.msra.mxu0 0.0
  %1472 = vmatprep.subr.mxu0 0.0
  %1473 = vmatpush2.msra.mxu0 0.0
  %1474 = vmatprep.subr.mxu0 0.0
  %1475 = vmatpush2.msra.mxu0 0.0
  %1476 = vmatprep.subr.mxu0 0.0
  %1477 = vmatpush2.msra.mxu0 0.0
  %1478 = vmatprep.subr.mxu0 0.0
  %1479 = vmatpush2.msra.mxu0 0.0
  %1480 = vmatprep.subr.mxu0 0.0
  %1481 = vmatpush2.msra.mxu0 0.0
  %1482 = vmatprep.subr.mxu0 0.0
  %1483 = vmatpush2.msra.mxu0 0.0
  %1484 = vmatprep.subr.mxu0 0.0
  %1485 = vmatpush2.msra.mxu0 0.0
  %1486 = vmatprep.mubr.f32.mxu0 0.0
  %1487 = vmatmul.mubr.f32.gmra.mxu0 %v1350
  %v1488 = vpop.f32.mrf.mxu0
  %v1489 = vadd.f32 0.0, %v1488
  %v1490 = vpop.f32.mrf.mxu0
  %1491 = vdwg.mxu0
  %v1492 = vmul.f32 %v1489, 0.001953125
  %v1493 = vmul.f32 %v1421, %v1421
  %v1494 = vsub.f32 %v1492, %v1493
  %s1495 = scalar_lea.vmem %s3, 1
  %v1496 = vld [vmem:[%s1495] sm:$0x1]
  %v1497 = vadd.f32 %v1494, 1e-05
  %v1498 = vrsqrt.pop %v1497
  %v1499 = vmul.f32 %v1496, %v1498
  %s1500 = scalar_lea.vmem %s4, 1
  %v1501 = vld [vmem:[%s1500] sm:$0x1]
  %v1502 = vmul.f32 %v1421, %v1499
  %v1503 = vsub.f32 %v1501, %v1502
  %v1505 = vsel %vm712, %v1499, 0
  %1507 = vmatprep.subr.mxu0 0.0
  %1508 = vmatpush1.msra.mxu0 0.0
  %1509 = vmatprep.subr.mxu0 0.0
  %1510 = vmatpush1.msra.mxu0 0.0
  %1511 = vmatprep.subr.mxu0 0.0
  %1512 = vmatpush1.msra.mxu0 0.0
  %1513 = vmatprep.subr.mxu0 0.0
  %1514 = vmatpush1.msra.mxu0 0.0
  %1515 = vmatprep.subr.mxu0 0.0
  %1516 = vmatpush1.msra.mxu0 0.0
  %1517 = vmatprep.subr.mxu0 0.0
  %1518 = vmatpush1.msra.mxu0 0.0
  %1519 = vmatprep.subr.mxu0 0.0
  %1520 = vmatpush1.msra.mxu0 0.0
  %1521 = vmatprep.subr.mxu0 0.0
  %1522 = vmatpush1.msra.mxu0 0.0
  %1523 = vmatprep.subr.mxu0 0.0
  %1524 = vmatpush1.msra.mxu0 0.0
  %1525 = vmatprep.subr.mxu0 0.0
  %1526 = vmatpush1.msra.mxu0 0.0
  %1527 = vmatprep.subr.mxu0 0.0
  %1528 = vmatpush1.msra.mxu0 0.0
  %1529 = vmatprep.subr.mxu0 0.0
  %1530 = vmatpush1.msra.mxu0 0.0
  %1531 = vmatprep.subr.mxu0 0.0
  %1532 = vmatpush1.msra.mxu0 0.0
  %1533 = vmatprep.subr.mxu0 0.0
  %1534 = vmatpush1.msra.mxu0 0.0
  %1535 = vmatprep.subr.mxu0 0.0
  %1536 = vmatpush1.msra.mxu0 0.0
  %1537 = vmatprep.subr.mxu0 0.0
  %1538 = vmatpush1.msra.mxu0 %v27
  %1539 = vmatprep.subr.mxu0 0.0
  %1540 = vmatpush2.msra.mxu0 0.0
  %1541 = vmatprep.subr.mxu0 0.0
  %1542 = vmatpush2.msra.mxu0 0.0
  %1543 = vmatprep.subr.mxu0 0.0
  %1544 = vmatpush2.msra.mxu0 0.0
  %1545 = vmatprep.subr.mxu0 0.0
  %1546 = vmatpush2.msra.mxu0 0.0
  %1547 = vmatprep.subr.mxu0 0.0
  %1548 = vmatpush2.msra.mxu0 0.0
  %1549 = vmatprep.subr.mxu0 0.0
  %1550 = vmatpush2.msra.mxu0 0.0
  %1551 = vmatprep.subr.mxu0 0.0
  %1552 = vmatpush2.msra.mxu0 0.0
  %1553 = vmatprep.subr.mxu0 0.0
  %1554 = vmatpush2.msra.mxu0 0.0
  %1555 = vmatprep.subr.mxu0 0.0
  %1556 = vmatpush2.msra.mxu0 0.0
  %1557 = vmatprep.subr.mxu0 0.0
  %1558 = vmatpush2.msra.mxu0 0.0
  %1559 = vmatprep.subr.mxu0 0.0
  %1560 = vmatpush2.msra.mxu0 0.0
  %1561 = vmatprep.subr.mxu0 0.0
  %1562 = vmatpush2.msra.mxu0 0.0
  %1563 = vmatprep.subr.mxu0 0.0
  %1564 = vmatpush2.msra.mxu0 0.0
  %1565 = vmatprep.subr.mxu0 0.0
  %1566 = vmatpush2.msra.mxu0 0.0
  %1567 = vmatprep.subr.mxu0 0.0
  %1568 = vmatpush2.msra.mxu0 0.0
  %1569 = vmatprep.subr.mxu0 0.0
  %1570 = vmatpush2.msra.mxu0 0.0
  %1571 = vmatprep.mubr.f32.mxu0 0.0
  %1572 = vmatmul.mubr.f32.gmra.mxu0 %v1505
  %v1573 = vpop.f32.mrf.mxu0
  %v1574 = vadd.f32 0.0, %v1573
  %v1575 = vpop.f32.mrf.mxu0
  %1576 = vdwg.mxu0
  %v1578 = vsel %vm712, %v1503, 0
  %1580 = vmatprep.subr.mxu0 0.0
  %1581 = vmatpush1.msra.mxu0 0.0
  %1582 = vmatprep.subr.mxu0 0.0
  %1583 = vmatpush1.msra.mxu0 0.0
  %1584 = vmatprep.subr.mxu0 0.0
  %1585 = vmatpush1.msra.mxu0 0.0
  %1586 = vmatprep.subr.mxu0 0.0
  %1587 = vmatpush1.msra.mxu0 0.0
  %1588 = vmatprep.subr.mxu0 0.0
  %1589 = vmatpush1.msra.mxu0 0.0
  %1590 = vmatprep.subr.mxu0 0.0
  %1591 = vmatpush1.msra.mxu0 0.0
  %1592 = vmatprep.subr.mxu0 0.0
  %1593 = vmatpush1.msra.mxu0 0.0
  %1594 = vmatprep.subr.mxu0 0.0
  %1595 = vmatpush1.msra.mxu0 0.0
  %1596 = vmatprep.subr.mxu0 0.0
  %1597 = vmatpush1.msra.mxu0 0.0
  %1598 = vmatprep.subr.mxu0 0.0
  %1599 = vmatpush1.msra.mxu0 0.0
  %1600 = vmatprep.subr.mxu0 0.0
  %1601 = vmatpush1.msra.mxu0 0.0
  %1602 = vmatprep.subr.mxu0 0.0
  %1603 = vmatpush1.msra.mxu0 0.0
  %1604 = vmatprep.subr.mxu0 0.0
  %1605 = vmatpush1.msra.mxu0 0.0
  %1606 = vmatprep.subr.mxu0 0.0
  %1607 = vmatpush1.msra.mxu0 0.0
  %1608 = vmatprep.subr.mxu0 0.0
  %1609 = vmatpush1.msra.mxu0 0.0
  %1610 = vmatprep.subr.mxu0 0.0
  %1611 = vmatpush1.msra.mxu0 %v27
  %1612 = vmatprep.subr.mxu0 0.0
  %1613 = vmatpush2.msra.mxu0 0.0
  %1614 = vmatprep.subr.mxu0 0.0
  %1615 = vmatpush2.msra.mxu0 0.0
  %1616 = vmatprep.subr.mxu0 0.0
  %1617 = vmatpush2.msra.mxu0 0.0
  %1618 = vmatprep.subr.mxu0 0.0
  %1619 = vmatpush2.msra.mxu0 0.0
  %1620 = vmatprep.subr.mxu0 0.0
  %1621 = vmatpush2.msra.mxu0 0.0
  %1622 = vmatprep.subr.mxu0 0.0
  %1623 = vmatpush2.msra.mxu0 0.0
  %1624 = vmatprep.subr.mxu0 0.0
  %1625 = vmatpush2.msra.mxu0 0.0
  %1626 = vmatprep.subr.mxu0 0.0
  %1627 = vmatpush2.msra.mxu0 0.0
  %1628 = vmatprep.subr.mxu0 0.0
  %1629 = vmatpush2.msra.mxu0 0.0
  %1630 = vmatprep.subr.mxu0 0.0
  %1631 = vmatpush2.msra.mxu0 0.0
  %1632 = vmatprep.subr.mxu0 0.0
  %1633 = vmatpush2.msra.mxu0 0.0
  %1634 = vmatprep.subr.mxu0 0.0
  %1635 = vmatpush2.msra.mxu0 0.0
  %1636 = vmatprep.subr.mxu0 0.0
  %1637 = vmatpush2.msra.mxu0 0.0
  %1638 = vmatprep.subr.mxu0 0.0
  %1639 = vmatpush2.msra.mxu0 0.0
  %1640 = vmatprep.subr.mxu0 0.0
  %1641 = vmatpush2.msra.mxu0 0.0
  %1642 = vmatprep.subr.mxu0 0.0
  %1643 = vmatpush2.msra.mxu0 0.0
  %1644 = vmatprep.mubr.f32.mxu0 0.0
  %1645 = vmatmul.mubr.f32.gmra.mxu0 %v1578
  %v1646 = vpop.f32.mrf.mxu0
  %v1647 = vadd.f32 0.0, %v1646
  %v1648 = vpop.f32.mrf.mxu0
  %1649 = vdwg.mxu0
  %v1650 = vlaneseq
  %v1651 = vshrl.u32 %v1650, 7
  %v1652 = vsub.s32 0, %v1651
  %v1653 = vrot.slane %v1574, %v1652
  %v1654 = vmul.f32 %v1325, %v1653
  %v1655 = vmul.f32 %v1326, %v1653
  %v1656 = vmul.f32 %v1327, %v1653
  %v1657 = vmul.f32 %v1328, %v1653
  %v1658 = vlaneseq
  %v1659 = vshrl.u32 %v1658, 7
  %v1660 = vsub.s32 0, %v1659
  %v1661 = vrot.slane %v1647, %v1660
  %v1662 = vadd.f32 %v1654, %v1661
  %v1663 = vadd.f32 %v1655, %v1661
  %v1664 = vadd.f32 %v1656, %v1661
  %v1665 = vadd.f32 %v1657, %v1661
  %v1666 = vmax.f32 %v1662, 0.0
  %v1667 = vmax.f32 %v1663, 0.0
  %v1668 = vmax.f32 %v1664, 0.0
  %v1669 = vmax.f32 %v1665, 0.0
  %1670 = vst [vmem:[%s7] sm:$0xff] %v1666
  %1671 = vst [vmem:[%s7 + $0x8] sm:$0xff] %v1667
  %1672 = vst [vmem:[%s7 + $0x10] sm:$0xff] %v1668
  %1673 = vst [vmem:[%s7 + $0x18] sm:$0xff] %v1669
  // Predicated region
  $region30: #{unet_conv2_forward.1} parent=0 // pred_check
    _
  $region31: #{unet_conv2_forward.1} parent=0 // pred_check_branch
    %1675 = sbr.rel (0) target = $region33
  $region32: #{unet_conv2_forward.1} parent=0 // pred_region
    _
  $region33: #{unet_conv2_forward.1} parent=0 // pred_fallthru
    _
  // Predicated region
  $region34: #{unet_conv2_forward.1} parent=0 // pred_check
    _
  $region35: #{unet_conv2_forward.1} parent=0 // pred_check_branch
    %1677 = sbr.rel (0) target = $region37
  $region36: #{unet_conv2_forward.1} parent=0 // pred_region
    _
  $region37: #{unet_conv2_forward.1} parent=0 // pred_fallthru
    _

</llo_original>
